<compile_context>
chip_gen: v5e
topology: v5e:2x2
jax: 0.10.0
libtpu: 0.0.40
codegen_flags: <defaults>
</compile_context>

<pallas_src>
import jax
import jax.numpy as jnp
from jax.experimental import pallas as pl
from jax.experimental.pallas import tpu as pltpu

HIGHEST = jax.lax.Precision.HIGHEST


def _full_spec(shape):
    """Whole-array VMEM block under a 1-D grid (same block every step)."""
    nd = len(shape)
    return pl.BlockSpec(shape, lambda b, _nd=nd: (0,) * _nd)


def _block_diag(w):
    """(H, fin, fout) -> block-diagonal (H*fin, H*fout).  Used only for the
    tiny fc3 weights so the final prediction is a single contiguous matmul."""
    H, fin, fout = w.shape
    eye = jnp.eye(H, dtype=w.dtype)
    return (eye[:, None, :, None] * w[:, :, None, :]).reshape(H * fin, H * fout)


# ----------------------------------------------------------------------------
# The single fused kernel: all TCNSE levels + heads, one batch row per grid step
# ----------------------------------------------------------------------------
def _make_fused_kernel(T, K, level_cfg, MAXPAD, MAXC, H, twoC):
    def kernel(*args):
        it = iter(args)
        x_ref = next(it)
        lvls = []
        for cfg in level_cfg:
            d = {"w1": next(it), "b1": next(it), "w2": next(it), "b2": next(it)}
            if cfg["has_down"]:
                d["wd"] = next(it)
                d["bd"] = next(it)
            d["sw1"] = next(it)
            d["sw2"] = next(it)
            lvls.append(d)
        ws_ref, bs_ref = next(it), next(it)
        w1c_ref, b1c_ref = next(it), next(it)
        w2h_ref, b2h_ref = next(it), next(it)
        w3bd_ref, b3c_ref = next(it), next(it)
        o_ref = next(it)
        tbuf = next(it)

        # Causal zero rows at the top of the time buffer.  They are never
        # overwritten below (activation writes only touch rows
        # [MAXPAD, MAXPAD+T)), so this one tiny store per grid step keeps the
        # kernel correct even when the batch grid is split across TensorCores.
        tbuf[0:MAXPAD, :] = jnp.zeros((MAXPAD, MAXC), jnp.float32)

        def causal_conv(h, w_ref, b_ref, dil, cin):
            """Dilated causal conv as one contiguous-tap im2col matmul (bf16)."""
            pad = (K - 1) * dil
            tbuf[MAXPAD:MAXPAD + T, 0:cin] = h           # aligned copy-in (f32)
            views = [
                tbuf[MAXPAD - pad + k * dil:MAXPAD - pad + k * dil + T, 0:cin]
                for k in range(K)
            ]
            im = jnp.concatenate(views, axis=1).astype(jnp.bfloat16)  # (T, K*cin)
            return (jnp.dot(im, w_ref[...], preferred_element_type=jnp.float32)
                    + b_ref[...])

        h = x_ref[0]                                      # (T, Cin0) f32
        for cfg, refs in zip(level_cfg, lvls):
            cin, c, dil = cfg["cin"], cfg["c"], cfg["dil"]

            # conv1 -> chomp -> ReLU, conv2 -> chomp -> ReLU (dropout = identity)
            h1 = jnp.maximum(causal_conv(h, refs["w1"], refs["b1"], dil, cin), 0.0)
            out = jnp.maximum(causal_conv(h1, refs["w2"], refs["b2"], dil, c), 0.0)

            # residual branch (1x1 downsample conv when Cin != C)
            if cfg["has_down"]:
                res = (jnp.dot(h.astype(jnp.bfloat16), refs["wd"][...],
                               preferred_element_type=jnp.float32)
                       + refs["bd"][...])
            else:
                res = h

            # SE: avg-pool over T -> FC -> ReLU -> FC -> sigmoid -> scale (f32)
            pooled = jnp.mean(out, axis=0, keepdims=True)            # (1, c)
            hid = jnp.maximum(
                jnp.dot(pooled, refs["sw1"][...], precision=HIGHEST,
                        preferred_element_type=jnp.float32), 0.0)
            z = jnp.dot(hid, refs["sw2"][...], precision=HIGHEST,
                        preferred_element_type=jnp.float32)
            s = 1.0 / (1.0 + jnp.exp(-z))                            # sigmoid
            h = out * s + res
            if cfg["post_relu"]:
                h = jnp.maximum(h, 0.0)

        # ---- multi-task heads on the LAST timestep (all head FCs are
        # per-timestep, so this is exact and drops a factor of T of work)
        xl = h[T - 1:T, :]                                           # (1, C)
        shared = jnp.maximum(
            jnp.dot(xl.astype(jnp.bfloat16), ws_ref[...],
                    preferred_element_type=jnp.float32) + bs_ref[...], 0.0)
        h1c = jnp.maximum(
            jnp.dot(shared.astype(jnp.bfloat16), w1c_ref[...],
                    preferred_element_type=jnp.float32) + b1c_ref[...], 0.0)
        h2s = []
        for hh in range(H):                               # per-head fc2 (no zeros)
            part = h1c[:, hh * twoC:(hh + 1) * twoC].astype(jnp.bfloat16)
            h2s.append(jnp.maximum(
                jnp.dot(part, w2h_ref[hh],
                        preferred_element_type=jnp.float32) + b2h_ref[hh], 0.0))
        h2 = jnp.concatenate(h2s, axis=1).astype(jnp.bfloat16)       # (1, H*C)
        o_ref[0] = (jnp.dot(h2, w3bd_ref[...],
                            preferred_element_type=jnp.float32) + b3c_ref[...])

    return kernel


# ----------------------------------------------------------------------------
# Wrapper: weight packing + one pallas_call
# ----------------------------------------------------------------------------
def tcnse_mtl_forward(x, params):
    B, T, Cin0 = x.shape
    levels = params["levels"]
    K = levels[0]["w1"].shape[0]
    H = params["w1h"].shape[0]
    out_size = params["w3h"].shape[-1]
    twoC = params["w1h"].shape[2]

    inputs = [x]
    level_cfg = []
    maxpad = 0
    maxc = Cin0
    for i, lvl in enumerate(levels):
        dil = 2 ** i
        Ki, cin, c = lvl["w1"].shape
        maxpad = max(maxpad, (Ki - 1) * dil)
        maxc = max(maxc, c)
        has_down = "wd" in lvl
        level_cfg.append(dict(cin=cin, c=c, dil=dil, has_down=has_down,
                              post_relu=(i <= 1)))
        # contiguous tap packing: row k*cin + ch  <->  im2col column k*cin + ch
        inputs += [lvl["w1"].reshape(Ki * cin, c).astype(jnp.bfloat16), lvl["b1"],
                   lvl["w2"].reshape(Ki * c, c).astype(jnp.bfloat16), lvl["b2"]]
        if has_down:
            inputs += [lvl["wd"][0].astype(jnp.bfloat16), lvl["bd"]]
        inputs += [lvl["se_w1"], lvl["se_w2"]]

    W1cat = jnp.concatenate([params["w1h"][h] for h in range(H)],
                            axis=1).astype(jnp.bfloat16)             # (4C, H*2C)
    B1cat = params["b1h"].reshape(1, -1)
    W3bd = _block_diag(params["w3h"]).astype(jnp.bfloat16)           # (H*C, H*out)
    B3cat = params["b3h"].reshape(1, -1)
    inputs += [params["ws"].astype(jnp.bfloat16), params["bs"],
               W1cat, B1cat,
               params["w2h"].astype(jnp.bfloat16),
               params["b2h"].reshape(H, 1, -1),
               W3bd, B3cat]

    MAXPAD = max(8, ((maxpad + 7) // 8) * 8)      # sublane-aligned x placement

    in_specs = [pl.BlockSpec((1, T, Cin0), lambda b: (b, 0, 0))]
    in_specs += [_full_spec(a.shape) for a in inputs[1:]]

    out = pl.pallas_call(
        _make_fused_kernel(T, K, level_cfg, MAXPAD, maxc, H, twoC),
        out_shape=jax.ShapeDtypeStruct((B, 1, H * out_size), jnp.float32),
        grid=(B,),
        in_specs=in_specs,
        out_specs=pl.BlockSpec((1, 1, H * out_size), lambda b: (b, 0, 0)),
        scratch_shapes=[pltpu.VMEM((MAXPAD + T, maxc), jnp.float32)],
        compiler_params=pltpu.CompilerParams(
            dimension_semantics=("parallel",),
            vmem_limit_bytes=32 * 1024 * 1024),
    )(*inputs)

    pred = out.reshape(B, H, out_size)            # torch.stack(dim=1)
    if out_size == 1:
        pred = pred[..., 0]                       # .squeeze(-1)
    return pred


# ----------------------------------------------------------------------------
# Deterministic parameter init (synthetic; mirrors module shapes)
# ----------------------------------------------------------------------------
def init_params(key, input_size, num_channels, kernel_size, output_size,
                reduction_ratio=16):
    keys = iter(jax.random.split(key, 64))
    params = {"levels": []}
    c_prev = input_size
    for c in num_channels:
        lvl = {
            "w1": 0.01 * jax.random.normal(next(keys), (kernel_size, c_prev, c), jnp.float32),
            "b1": 0.01 * jax.random.normal(next(keys), (1, c), jnp.float32),
            "w2": 0.01 * jax.random.normal(next(keys), (kernel_size, c, c), jnp.float32),
            "b2": 0.01 * jax.random.normal(next(keys), (1, c), jnp.float32),
        }
        if c_prev != c:
            lvl["wd"] = 0.01 * jax.random.normal(next(keys), (1, c_prev, c), jnp.float32)
            lvl["bd"] = 0.01 * jax.random.normal(next(keys), (1, c), jnp.float32)
        r = c // reduction_ratio
        lvl["se_w1"] = jax.random.normal(next(keys), (c, r), jnp.float32) / jnp.sqrt(c)
        lvl["se_w2"] = jax.random.normal(next(keys), (r, c), jnp.float32) / jnp.sqrt(r)
        params["levels"].append(lvl)
        c_prev = c

    C = num_channels[-1]

    def lin(k, fin, fout):
        return jax.random.normal(k, (fin, fout), jnp.float32) / jnp.sqrt(fin)

    params["ws"] = lin(next(keys), C, 4 * C)
    params["bs"] = 0.01 * jax.random.normal(next(keys), (1, 4 * C), jnp.float32)
    params["w1h"] = jnp.stack([lin(next(keys), 4 * C, 2 * C) for _ in range(3)])
    params["b1h"] = 0.01 * jax.random.normal(next(keys), (3, 2 * C), jnp.float32)
    params["w2h"] = jnp.stack([lin(next(keys), 2 * C, C) for _ in range(3)])
    params["b2h"] = 0.01 * jax.random.normal(next(keys), (3, C), jnp.float32)
    params["w3h"] = jnp.stack([lin(next(keys), C, output_size) for _ in range(3)])
    params["b3h"] = 0.01 * jax.random.normal(next(keys), (3, output_size), jnp.float32)
    return params


# ----------------------------------------------------------------------------
# Pure-JAX f32 reference (same math, no Pallas) for the numerical check.
# Heads are applied per-timestep then sliced at -1, exactly like the module.
# ----------------------------------------------------------------------------
def reference_forward(x, params):
    P = HIGHEST

    def conv(xin, w, b, dil):
        K = w.shape[0]
        pad = (K - 1) * dil
        T = xin.shape[1]
        xp = jnp.pad(xin, ((0, 0), (pad, 0), (0, 0)))
        out = jnp.zeros((xin.shape[0], T, w.shape[2]), jnp.float32)
        for k in range(K):
            out = out + jnp.einsum("btc,cd->btd", xp[:, k * dil:k * dil + T, :],
                                   w[k], precision=P)
        return out + b[None]

    h = x
    for i, lvl in enumerate(params["levels"]):
        dil = 2 ** i
        o = jnp.maximum(conv(h, lvl["w1"], lvl["b1"], dil), 0.0)
        o = jnp.maximum(conv(o, lvl["w2"], lvl["b2"], dil), 0.0)
        res = h if "wd" not in lvl else conv(h, lvl["wd"], lvl["bd"], 1)
        pooled = jnp.mean(o, axis=1)
        hid = jnp.maximum(jnp.dot(pooled, lvl["se_w1"], precision=P), 0.0)
        s = jax.nn.sigmoid(jnp.dot(hid, lvl["se_w2"], precision=P))
        y = o * s[:, None, :] + res
        if i <= 1:
            y = jnp.maximum(y, 0.0)
        h = y

    shared = jnp.maximum(
        jnp.einsum("btc,cd->btd", h, params["ws"], precision=P) + params["bs"][None], 0.0)
    preds = []
    for hh in range(3):
        a = jnp.maximum(
            jnp.einsum("btc,cd->btd", shared, params["w1h"][hh], precision=P)
            + params["b1h"][hh], 0.0)
        b2 = jnp.maximum(
            jnp.einsum("btc,cd->btd", a, params["w2h"][hh], precision=P)
            + params["b2h"][hh], 0.0)
        preds.append(jnp.dot(b2[:, -1, :], params["w3h"][hh], precision=P)
                     + params["b3h"][hh])
    pred = jnp.stack(preds, axis=1)
    if pred.shape[-1] == 1:
        pred = pred[..., 0]
    return pred


if __name__ == "__main__":
    B, T = 2, 16
    input_size = 4
    num_channels = [32, 32]
    kernel_size = 3
    output_size = 1

    key = jax.random.PRNGKey(0)
    kx, kp = jax.random.split(key)
    x = jax.random.normal(kx, (B, T, input_size), jnp.float32)
    params = init_params(kp, input_size, num_channels, kernel_size, output_size,
                         reduction_ratio=16)

    pred = jax.jit(tcnse_mtl_forward)(x, params)
    pred = jax.block_until_ready(pred)

    ref = reference_forward(x, params)
    err = float(jnp.max(jnp.abs(pred - ref)))
    assert pred.shape == (B, 3), pred.shape
    # bf16 MXU operands (f32 accumulation) vs. pure-f32 reference.
    assert err < 5e-3, f"mismatch vs reference: {err}"
    # TODO(synk): nn.Dropout is identity here (eval-mode forward); training-time
    # dropout masks would need pltpu.prng_* inside the fused kernel.
    print("KERNEL_OK")
</pallas_src>

<mosaic_0001>
module attributes {stable_mosaic.version = 11 : i64} {
  func.func @kernel(%arg0: i32, %arg1: memref<1x16x4xf32, #tpu.memory_space<vmem>>, %arg2: memref<12x32xbf16, #tpu.memory_space<vmem>>, %arg3: memref<1x32xf32, #tpu.memory_space<vmem>>, %arg4: memref<96x32xbf16, #tpu.memory_space<vmem>>, %arg5: memref<1x32xf32, #tpu.memory_space<vmem>>, %arg6: memref<4x32xbf16, #tpu.memory_space<vmem>>, %arg7: memref<1x32xf32, #tpu.memory_space<vmem>>, %arg8: memref<32x2xf32, #tpu.memory_space<vmem>>, %arg9: memref<2x32xf32, #tpu.memory_space<vmem>>, %arg10: memref<96x32xbf16, #tpu.memory_space<vmem>>, %arg11: memref<1x32xf32, #tpu.memory_space<vmem>>, %arg12: memref<96x32xbf16, #tpu.memory_space<vmem>>, %arg13: memref<1x32xf32, #tpu.memory_space<vmem>>, %arg14: memref<32x2xf32, #tpu.memory_space<vmem>>, %arg15: memref<2x32xf32, #tpu.memory_space<vmem>>, %arg16: memref<32x128xbf16, #tpu.memory_space<vmem>>, %arg17: memref<1x128xf32, #tpu.memory_space<vmem>>, %arg18: memref<128x192xbf16, #tpu.memory_space<vmem>>, %arg19: memref<1x192xf32, #tpu.memory_space<vmem>>, %arg20: memref<3x64x32xbf16, #tpu.memory_space<vmem>>, %arg21: memref<3x1x32xf32, #tpu.memory_space<vmem>>, %arg22: memref<96x3xbf16, #tpu.memory_space<vmem>>, %arg23: memref<1x3xf32, #tpu.memory_space<vmem>>, %arg24: memref<1x1x3xf32, #tpu.memory_space<vmem>>, %arg25: memref<24x32xf32, #tpu.memory_space<vmem>>) attributes {dimension_semantics = [#tpu.dimension_semantics<parallel>], iteration_bounds = array<i64: 2>, scalar_prefetch = 0 : i64, scratch_operands = 1 : i64, tpu.core_type = #tpu.core_type<tc>, window_params = [{transform_indices = @transform_0, window_bounds = array<i64: 1, 16, 4>}, {pipeline_mode = #tpu.pipeline_mode<synchronous>, transform_indices = @transform_1, window_bounds = array<i64: 12, 32>}, {pipeline_mode = #tpu.pipeline_mode<synchronous>, transform_indices = @transform_2, window_bounds = array<i64: 1, 32>}, {pipeline_mode = #tpu.pipeline_mode<synchronous>, transform_indices = @transform_3, window_bounds = array<i64: 96, 32>}, {pipeline_mode = #tpu.pipeline_mode<synchronous>, transform_indices = @transform_4, window_bounds = array<i64: 1, 32>}, {pipeline_mode = #tpu.pipeline_mode<synchronous>, transform_indices = @transform_5, window_bounds = array<i64: 4, 32>}, {pipeline_mode = #tpu.pipeline_mode<synchronous>, transform_indices = @transform_6, window_bounds = array<i64: 1, 32>}, {pipeline_mode = #tpu.pipeline_mode<synchronous>, transform_indices = @transform_7, window_bounds = array<i64: 32, 2>}, {pipeline_mode = #tpu.pipeline_mode<synchronous>, transform_indices = @transform_8, window_bounds = array<i64: 2, 32>}, {pipeline_mode = #tpu.pipeline_mode<synchronous>, transform_indices = @transform_9, window_bounds = array<i64: 96, 32>}, {pipeline_mode = #tpu.pipeline_mode<synchronous>, transform_indices = @transform_10, window_bounds = array<i64: 1, 32>}, {pipeline_mode = #tpu.pipeline_mode<synchronous>, transform_indices = @transform_11, window_bounds = array<i64: 96, 32>}, {pipeline_mode = #tpu.pipeline_mode<synchronous>, transform_indices = @transform_12, window_bounds = array<i64: 1, 32>}, {pipeline_mode = #tpu.pipeline_mode<synchronous>, transform_indices = @transform_13, window_bounds = array<i64: 32, 2>}, {pipeline_mode = #tpu.pipeline_mode<synchronous>, transform_indices = @transform_14, window_bounds = array<i64: 2, 32>}, {pipeline_mode = #tpu.pipeline_mode<synchronous>, transform_indices = @transform_15, window_bounds = array<i64: 32, 128>}, {pipeline_mode = #tpu.pipeline_mode<synchronous>, transform_indices = @transform_16, window_bounds = array<i64: 1, 128>}, {pipeline_mode = #tpu.pipeline_mode<synchronous>, transform_indices = @transform_17, window_bounds = array<i64: 128, 192>}, {pipeline_mode = #tpu.pipeline_mode<synchronous>, transform_indices = @transform_18, window_bounds = array<i64: 1, 192>}, {pipeline_mode = #tpu.pipeline_mode<synchronous>, transform_indices = @transform_19, window_bounds = array<i64: 3, 64, 32>}, {pipeline_mode = #tpu.pipeline_mode<synchronous>, transform_indices = @transform_20, window_bounds = array<i64: 3, 1, 32>}, {pipeline_mode = #tpu.pipeline_mode<synchronous>, transform_indices = @transform_21, window_bounds = array<i64: 96, 3>}, {pipeline_mode = #tpu.pipeline_mode<synchronous>, transform_indices = @transform_22, window_bounds = array<i64: 1, 3>}, {transform_indices = @transform_23, window_bounds = array<i64: 1, 1, 3>}]} {
    %cst = arith.constant 0.000000e+00 : f32
    %0 = vector.broadcast %cst : f32 to vector<8x32xf32>
    %c0 = arith.constant 0 : index
    %c0_0 = arith.constant 0 : index
    %1 = vector.load %arg25[%c0, %c0_0] : memref<24x32xf32, #tpu.memory_space<vmem>>, vector<8x32xf32>
    tpu.vector_store %arg25[%c0, %c0_0], %0 {strides = array<i32>} : memref<24x32xf32, #tpu.memory_space<vmem>>, vector<8x32xf32>,
    %c0_1 = arith.constant 0 : index
    %c0_2 = arith.constant 0 : index
    %c0_3 = arith.constant 0 : index
    %2 = vector.load %arg1[%c0_1, %c0_2, %c0_3] : memref<1x16x4xf32, #tpu.memory_space<vmem>>, vector<1x16x4xf32>
    %3 = vector.shape_cast %2 : vector<1x16x4xf32> to vector<16x4xf32>
    %c8 = arith.constant 8 : index
    %c0_4 = arith.constant 0 : index
    %4 = vector.load %arg25[%c8, %c0_4] : memref<24x32xf32, #tpu.memory_space<vmem>>, vector<16x4xf32>
    tpu.vector_store %arg25[%c8, %c0_4], %3 {strides = array<i32>} : memref<24x32xf32, #tpu.memory_space<vmem>>, vector<16x4xf32>,
    %c6 = arith.constant 6 : index
    %c0_5 = arith.constant 0 : index
    %5 = vector.load %arg25[%c6, %c0_5] : memref<24x32xf32, #tpu.memory_space<vmem>>, vector<16x4xf32>
    %c7 = arith.constant 7 : index
    %c0_6 = arith.constant 0 : index
    %6 = vector.load %arg25[%c7, %c0_6] : memref<24x32xf32, #tpu.memory_space<vmem>>, vector<16x4xf32>
    %c8_7 = arith.constant 8 : index
    %c0_8 = arith.constant 0 : index
    %7 = vector.load %arg25[%c8_7, %c0_8] : memref<24x32xf32, #tpu.memory_space<vmem>>, vector<16x4xf32>
    %8 = tpu.concatenate %5, %6, %7 in 1 : vector<16x4xf32>, vector<16x4xf32>, vector<16x4xf32> -> vector<16x12xf32>
    %9 = arith.truncf %8 : vector<16x12xf32> to vector<16x12xbf16>
    %c0_9 = arith.constant 0 : index
    %c0_10 = arith.constant 0 : index
    %10 = vector.load %arg2[%c0_9, %c0_10] : memref<12x32xbf16, #tpu.memory_space<vmem>>, vector<12x32xbf16>
    %cst_11 = arith.constant dense<0.000000e+00> : vector<16x32xf32>
    %11 = tpu.matmul %9, %10, %cst_11 {dimension_numbers = #tpu.dot_dimension_numbers<[1], [0], [0], [1], [0, 0, 1, 1], [], []>} : vector<16x12xbf16>, vector<12x32xbf16>, vector<16x32xf32> -> vector<16x32xf32>
    %c0_12 = arith.constant 0 : index
    %c0_13 = arith.constant 0 : index
    %12 = vector.load %arg3[%c0_12, %c0_13] : memref<1x32xf32, #tpu.memory_space<vmem>>, vector<1x32xf32>
    %13 = vector.broadcast %12 : vector<1x32xf32> to vector<16x32xf32>
    %14 = arith.addf %11, %13 : vector<16x32xf32>
    %cst_14 = arith.constant 0.000000e+00 : f32
    %15 = vector.broadcast %cst_14 : f32 to vector<16x32xf32>
    %16 = arith.maximumf %14, %15 : vector<16x32xf32>
    %c8_15 = arith.constant 8 : index
    %c0_16 = arith.constant 0 : index
    %17 = vector.load %arg25[%c8_15, %c0_16] : memref<24x32xf32, #tpu.memory_space<vmem>>, vector<16x32xf32>
    tpu.vector_store %arg25[%c8_15, %c0_16], %16 {strides = array<i32>} : memref<24x32xf32, #tpu.memory_space<vmem>>, vector<16x32xf32>,
    %c6_17 = arith.constant 6 : index
    %c0_18 = arith.constant 0 : index
    %18 = vector.load %arg25[%c6_17, %c0_18] : memref<24x32xf32, #tpu.memory_space<vmem>>, vector<16x32xf32>
    %c7_19 = arith.constant 7 : index
    %c0_20 = arith.constant 0 : index
    %19 = vector.load %arg25[%c7_19, %c0_20] : memref<24x32xf32, #tpu.memory_space<vmem>>, vector<16x32xf32>
    %c8_21 = arith.constant 8 : index
    %c0_22 = arith.constant 0 : index
    %20 = vector.load %arg25[%c8_21, %c0_22] : memref<24x32xf32, #tpu.memory_space<vmem>>, vector<16x32xf32>
    %21 = tpu.concatenate %18, %19, %20 in 1 : vector<16x32xf32>, vector<16x32xf32>, vector<16x32xf32> -> vector<16x96xf32>
    %22 = arith.truncf %21 : vector<16x96xf32> to vector<16x96xbf16>
    %c0_23 = arith.constant 0 : index
    %c0_24 = arith.constant 0 : index
    %23 = vector.load %arg4[%c0_23, %c0_24] : memref<96x32xbf16, #tpu.memory_space<vmem>>, vector<96x32xbf16>
    %cst_25 = arith.constant dense<0.000000e+00> : vector<16x32xf32>
    %24 = tpu.matmul %22, %23, %cst_25 {dimension_numbers = #tpu.dot_dimension_numbers<[1], [0], [0], [1], [0, 0, 1, 1], [], []>} : vector<16x96xbf16>, vector<96x32xbf16>, vector<16x32xf32> -> vector<16x32xf32>
    %c0_26 = arith.constant 0 : index
    %c0_27 = arith.constant 0 : index
    %25 = vector.load %arg5[%c0_26, %c0_27] : memref<1x32xf32, #tpu.memory_space<vmem>>, vector<1x32xf32>
    %26 = vector.broadcast %25 : vector<1x32xf32> to vector<16x32xf32>
    %27 = arith.addf %24, %26 : vector<16x32xf32>
    %cst_28 = arith.constant 0.000000e+00 : f32
    %28 = vector.broadcast %cst_28 : f32 to vector<16x32xf32>
    %29 = arith.maximumf %27, %28 : vector<16x32xf32>
    %30 = arith.truncf %3 : vector<16x4xf32> to vector<16x4xbf16>
    %c0_29 = arith.constant 0 : index
    %c0_30 = arith.constant 0 : index
    %31 = vector.load %arg6[%c0_29, %c0_30] : memref<4x32xbf16, #tpu.memory_space<vmem>>, vector<4x32xbf16>
    %cst_31 = arith.constant dense<0.000000e+00> : vector<16x32xf32>
    %32 = tpu.matmul %30, %31, %cst_31 {dimension_numbers = #tpu.dot_dimension_numbers<[1], [0], [0], [1], [0, 0, 1, 1], [], []>} : vector<16x4xbf16>, vector<4x32xbf16>, vector<16x32xf32> -> vector<16x32xf32>
    %c0_32 = arith.constant 0 : index
    %c0_33 = arith.constant 0 : index
    %33 = vector.load %arg7[%c0_32, %c0_33] : memref<1x32xf32, #tpu.memory_space<vmem>>, vector<1x32xf32>
    %34 = vector.broadcast %33 : vector<1x32xf32> to vector<16x32xf32>
    %35 = arith.addf %32, %34 : vector<16x32xf32>
    %cst_34 = arith.constant dense<0.000000e+00> : vector<32xf32>
    %36 = vector.multi_reduction <add>, %29, %cst_34 [0] : vector<16x32xf32> to vector<32xf32>
    %37 = vector.shape_cast %36 : vector<32xf32> to vector<1x32xf32>
    %cst_35 = arith.constant 1.600000e+01 : f32
    %38 = vector.broadcast %cst_35 : f32 to vector<1x32xf32>
    %39 = arith.divf %37, %38 : vector<1x32xf32>
    %c0_36 = arith.constant 0 : index
    %c0_37 = arith.constant 0 : index
    %40 = vector.load %arg8[%c0_36, %c0_37] : memref<32x2xf32, #tpu.memory_space<vmem>>, vector<32x2xf32>
    %cst_38 = arith.constant dense<0.000000e+00> : vector<1x2xf32>
    %41 = tpu.matmul %39, %40, %cst_38 {dimension_numbers = #tpu.dot_dimension_numbers<[1], [0], [0], [1], [0, 0, 1, 1], [], []>, precision = #tpu.contract_precision<fp32>} : vector<1x32xf32>, vector<32x2xf32>, vector<1x2xf32> -> vector<1x2xf32>
    %cst_39 = arith.constant 0.000000e+00 : f32
    %42 = vector.broadcast %cst_39 : f32 to vector<1x2xf32>
    %43 = arith.maximumf %41, %42 : vector<1x2xf32>
    %c0_40 = arith.constant 0 : index
    %c0_41 = arith.constant 0 : index
    %44 = vector.load %arg9[%c0_40, %c0_41] : memref<2x32xf32, #tpu.memory_space<vmem>>, vector<2x32xf32>
    %cst_42 = arith.constant dense<0.000000e+00> : vector<1x32xf32>
    %45 = tpu.matmul %43, %44, %cst_42 {dimension_numbers = #tpu.dot_dimension_numbers<[1], [0], [0], [1], [0, 0, 1, 1], [], []>, precision = #tpu.contract_precision<fp32>} : vector<1x2xf32>, vector<2x32xf32>, vector<1x32xf32> -> vector<1x32xf32>
    %cst_43 = arith.constant 0.000000e+00 : f32
    %46 = vector.broadcast %cst_43 : f32 to vector<1x32xf32>
    %47 = arith.subf %46, %45 : vector<1x32xf32>
    %48 = math.exp %47 : vector<1x32xf32>
    %cst_44 = arith.constant 1.000000e+00 : f32
    %49 = vector.broadcast %cst_44 : f32 to vector<1x32xf32>
    %50 = arith.addf %49, %48 : vector<1x32xf32>
    %cst_45 = arith.constant 1.000000e+00 : f32
    %51 = vector.broadcast %cst_45 : f32 to vector<1x32xf32>
    %52 = arith.divf %51, %50 : vector<1x32xf32>
    %53 = vector.broadcast %52 : vector<1x32xf32> to vector<16x32xf32>
    %54 = arith.mulf %29, %53 : vector<16x32xf32>
    %55 = arith.addf %54, %35 : vector<16x32xf32>
    %cst_46 = arith.constant 0.000000e+00 : f32
    %56 = vector.broadcast %cst_46 : f32 to vector<16x32xf32>
    %57 = arith.maximumf %55, %56 : vector<16x32xf32>
    %c8_47 = arith.constant 8 : index
    %c0_48 = arith.constant 0 : index
    %58 = vector.load %arg25[%c8_47, %c0_48] : memref<24x32xf32, #tpu.memory_space<vmem>>, vector<16x32xf32>
    tpu.vector_store %arg25[%c8_47, %c0_48], %57 {strides = array<i32>} : memref<24x32xf32, #tpu.memory_space<vmem>>, vector<16x32xf32>,
    %c4 = arith.constant 4 : index
    %c0_49 = arith.constant 0 : index
    %59 = vector.load %arg25[%c4, %c0_49] : memref<24x32xf32, #tpu.memory_space<vmem>>, vector<16x32xf32>
    %c6_50 = arith.constant 6 : index
    %c0_51 = arith.constant 0 : index
    %60 = vector.load %arg25[%c6_50, %c0_51] : memref<24x32xf32, #tpu.memory_space<vmem>>, vector<16x32xf32>
    %c8_52 = arith.constant 8 : index
    %c0_53 = arith.constant 0 : index
    %61 = vector.load %arg25[%c8_52, %c0_53] : memref<24x32xf32, #tpu.memory_space<vmem>>, vector<16x32xf32>
    %62 = tpu.concatenate %59, %60, %61 in 1 : vector<16x32xf32>, vector<16x32xf32>, vector<16x32xf32> -> vector<16x96xf32>
    %63 = arith.truncf %62 : vector<16x96xf32> to vector<16x96xbf16>
    %c0_54 = arith.constant 0 : index
    %c0_55 = arith.constant 0 : index
    %64 = vector.load %arg10[%c0_54, %c0_55] : memref<96x32xbf16, #tpu.memory_space<vmem>>, vector<96x32xbf16>
    %cst_56 = arith.constant dense<0.000000e+00> : vector<16x32xf32>
    %65 = tpu.matmul %63, %64, %cst_56 {dimension_numbers = #tpu.dot_dimension_numbers<[1], [0], [0], [1], [0, 0, 1, 1], [], []>} : vector<16x96xbf16>, vector<96x32xbf16>, vector<16x32xf32> -> vector<16x32xf32>
    %c0_57 = arith.constant 0 : index
    %c0_58 = arith.constant 0 : index
    %66 = vector.load %arg11[%c0_57, %c0_58] : memref<1x32xf32, #tpu.memory_space<vmem>>, vector<1x32xf32>
    %67 = vector.broadcast %66 : vector<1x32xf32> to vector<16x32xf32>
    %68 = arith.addf %65, %67 : vector<16x32xf32>
    %cst_59 = arith.constant 0.000000e+00 : f32
    %69 = vector.broadcast %cst_59 : f32 to vector<16x32xf32>
    %70 = arith.maximumf %68, %69 : vector<16x32xf32>
    %c8_60 = arith.constant 8 : index
    %c0_61 = arith.constant 0 : index
    %71 = vector.load %arg25[%c8_60, %c0_61] : memref<24x32xf32, #tpu.memory_space<vmem>>, vector<16x32xf32>
    tpu.vector_store %arg25[%c8_60, %c0_61], %70 {strides = array<i32>} : memref<24x32xf32, #tpu.memory_space<vmem>>, vector<16x32xf32>,
    %c4_62 = arith.constant 4 : index
    %c0_63 = arith.constant 0 : index
    %72 = vector.load %arg25[%c4_62, %c0_63] : memref<24x32xf32, #tpu.memory_space<vmem>>, vector<16x32xf32>
    %c6_64 = arith.constant 6 : index
    %c0_65 = arith.constant 0 : index
    %73 = vector.load %arg25[%c6_64, %c0_65] : memref<24x32xf32, #tpu.memory_space<vmem>>, vector<16x32xf32>
    %c8_66 = arith.constant 8 : index
    %c0_67 = arith.constant 0 : index
    %74 = vector.load %arg25[%c8_66, %c0_67] : memref<24x32xf32, #tpu.memory_space<vmem>>, vector<16x32xf32>
    %75 = tpu.concatenate %72, %73, %74 in 1 : vector<16x32xf32>, vector<16x32xf32>, vector<16x32xf32> -> vector<16x96xf32>
    %76 = arith.truncf %75 : vector<16x96xf32> to vector<16x96xbf16>
    %c0_68 = arith.constant 0 : index
    %c0_69 = arith.constant 0 : index
    %77 = vector.load %arg12[%c0_68, %c0_69] : memref<96x32xbf16, #tpu.memory_space<vmem>>, vector<96x32xbf16>
    %cst_70 = arith.constant dense<0.000000e+00> : vector<16x32xf32>
    %78 = tpu.matmul %76, %77, %cst_70 {dimension_numbers = #tpu.dot_dimension_numbers<[1], [0], [0], [1], [0, 0, 1, 1], [], []>} : vector<16x96xbf16>, vector<96x32xbf16>, vector<16x32xf32> -> vector<16x32xf32>
    %c0_71 = arith.constant 0 : index
    %c0_72 = arith.constant 0 : index
    %79 = vector.load %arg13[%c0_71, %c0_72] : memref<1x32xf32, #tpu.memory_space<vmem>>, vector<1x32xf32>
    %80 = vector.broadcast %79 : vector<1x32xf32> to vector<16x32xf32>
    %81 = arith.addf %78, %80 : vector<16x32xf32>
    %cst_73 = arith.constant 0.000000e+00 : f32
    %82 = vector.broadcast %cst_73 : f32 to vector<16x32xf32>
    %83 = arith.maximumf %81, %82 : vector<16x32xf32>
    %cst_74 = arith.constant dense<0.000000e+00> : vector<32xf32>
    %84 = vector.multi_reduction <add>, %83, %cst_74 [0] : vector<16x32xf32> to vector<32xf32>
    %85 = vector.shape_cast %84 : vector<32xf32> to vector<1x32xf32>
    %cst_75 = arith.constant 1.600000e+01 : f32
    %86 = vector.broadcast %cst_75 : f32 to vector<1x32xf32>
    %87 = arith.divf %85, %86 : vector<1x32xf32>
    %c0_76 = arith.constant 0 : index
    %c0_77 = arith.constant 0 : index
    %88 = vector.load %arg14[%c0_76, %c0_77] : memref<32x2xf32, #tpu.memory_space<vmem>>, vector<32x2xf32>
    %cst_78 = arith.constant dense<0.000000e+00> : vector<1x2xf32>
    %89 = tpu.matmul %87, %88, %cst_78 {dimension_numbers = #tpu.dot_dimension_numbers<[1], [0], [0], [1], [0, 0, 1, 1], [], []>, precision = #tpu.contract_precision<fp32>} : vector<1x32xf32>, vector<32x2xf32>, vector<1x2xf32> -> vector<1x2xf32>
    %cst_79 = arith.constant 0.000000e+00 : f32
    %90 = vector.broadcast %cst_79 : f32 to vector<1x2xf32>
    %91 = arith.maximumf %89, %90 : vector<1x2xf32>
    %c0_80 = arith.constant 0 : index
    %c0_81 = arith.constant 0 : index
    %92 = vector.load %arg15[%c0_80, %c0_81] : memref<2x32xf32, #tpu.memory_space<vmem>>, vector<2x32xf32>
    %cst_82 = arith.constant dense<0.000000e+00> : vector<1x32xf32>
    %93 = tpu.matmul %91, %92, %cst_82 {dimension_numbers = #tpu.dot_dimension_numbers<[1], [0], [0], [1], [0, 0, 1, 1], [], []>, precision = #tpu.contract_precision<fp32>} : vector<1x2xf32>, vector<2x32xf32>, vector<1x32xf32> -> vector<1x32xf32>
    %cst_83 = arith.constant 0.000000e+00 : f32
    %94 = vector.broadcast %cst_83 : f32 to vector<1x32xf32>
    %95 = arith.subf %94, %93 : vector<1x32xf32>
    %96 = math.exp %95 : vector<1x32xf32>
    %cst_84 = arith.constant 1.000000e+00 : f32
    %97 = vector.broadcast %cst_84 : f32 to vector<1x32xf32>
    %98 = arith.addf %97, %96 : vector<1x32xf32>
    %cst_85 = arith.constant 1.000000e+00 : f32
    %99 = vector.broadcast %cst_85 : f32 to vector<1x32xf32>
    %100 = arith.divf %99, %98 : vector<1x32xf32>
    %101 = vector.broadcast %100 : vector<1x32xf32> to vector<16x32xf32>
    %102 = arith.mulf %83, %101 : vector<16x32xf32>
    %103 = arith.addf %102, %57 : vector<16x32xf32>
    %cst_86 = arith.constant 0.000000e+00 : f32
    %104 = vector.broadcast %cst_86 : f32 to vector<16x32xf32>
    %105 = arith.maximumf %103, %104 : vector<16x32xf32>
    %106 = vector.extract_strided_slice %105 {offsets = [15, 0], sizes = [1, 32], strides = [1, 1]} : vector<16x32xf32> to vector<1x32xf32>
    %107 = arith.truncf %106 : vector<1x32xf32> to vector<1x32xbf16>
    %c0_87 = arith.constant 0 : index
    %c0_88 = arith.constant 0 : index
    %108 = vector.load %arg16[%c0_87, %c0_88] : memref<32x128xbf16, #tpu.memory_space<vmem>>, vector<32x128xbf16>
    %cst_89 = arith.constant dense<0.000000e+00> : vector<1x128xf32>
    %109 = tpu.matmul %107, %108, %cst_89 {dimension_numbers = #tpu.dot_dimension_numbers<[1], [0], [0], [1], [0, 0, 1, 1], [], []>} : vector<1x32xbf16>, vector<32x128xbf16>, vector<1x128xf32> -> vector<1x128xf32>
    %c0_90 = arith.constant 0 : index
    %c0_91 = arith.constant 0 : index
    %110 = vector.load %arg17[%c0_90, %c0_91] : memref<1x128xf32, #tpu.memory_space<vmem>>, vector<1x128xf32>
    %111 = arith.addf %109, %110 : vector<1x128xf32>
    %cst_92 = arith.constant 0.000000e+00 : f32
    %112 = vector.broadcast %cst_92 : f32 to vector<1x128xf32>
    %113 = arith.maximumf %111, %112 : vector<1x128xf32>
    %114 = arith.truncf %113 : vector<1x128xf32> to vector<1x128xbf16>
    %c0_93 = arith.constant 0 : index
    %c0_94 = arith.constant 0 : index
    %115 = vector.load %arg18[%c0_93, %c0_94] : memref<128x192xbf16, #tpu.memory_space<vmem>>, vector<128x192xbf16>
    %cst_95 = arith.constant dense<0.000000e+00> : vector<1x192xf32>
    %116 = tpu.matmul %114, %115, %cst_95 {dimension_numbers = #tpu.dot_dimension_numbers<[1], [0], [0], [1], [0, 0, 1, 1], [], []>} : vector<1x128xbf16>, vector<128x192xbf16>, vector<1x192xf32> -> vector<1x192xf32>
    %c0_96 = arith.constant 0 : index
    %c0_97 = arith.constant 0 : index
    %117 = vector.load %arg19[%c0_96, %c0_97] : memref<1x192xf32, #tpu.memory_space<vmem>>, vector<1x192xf32>
    %118 = arith.addf %116, %117 : vector<1x192xf32>
    %cst_98 = arith.constant 0.000000e+00 : f32
    %119 = vector.broadcast %cst_98 : f32 to vector<1x192xf32>
    %120 = arith.maximumf %118, %119 : vector<1x192xf32>
    %121 = vector.extract_strided_slice %120 {offsets = [0, 0], sizes = [1, 64], strides = [1, 1]} : vector<1x192xf32> to vector<1x64xf32>
    %122 = arith.truncf %121 : vector<1x64xf32> to vector<1x64xbf16>
    %c0_99 = arith.constant 0 : index
    %c0_100 = arith.constant 0 : index
    %c0_101 = arith.constant 0 : index
    %123 = vector.load %arg20[%c0_99, %c0_100, %c0_101] : memref<3x64x32xbf16, #tpu.memory_space<vmem>>, vector<1x64x32xbf16>
    %124 = vector.shape_cast %123 : vector<1x64x32xbf16> to vector<64x32xbf16>
    %cst_102 = arith.constant dense<0.000000e+00> : vector<1x32xf32>
    %125 = tpu.matmul %122, %124, %cst_102 {dimension_numbers = #tpu.dot_dimension_numbers<[1], [0], [0], [1], [0, 0, 1, 1], [], []>} : vector<1x64xbf16>, vector<64x32xbf16>, vector<1x32xf32> -> vector<1x32xf32>
    %c0_103 = arith.constant 0 : index
    %c0_104 = arith.constant 0 : index
    %c0_105 = arith.constant 0 : index
    %126 = vector.load %arg21[%c0_103, %c0_104, %c0_105] : memref<3x1x32xf32, #tpu.memory_space<vmem>>, vector<1x1x32xf32>
    %127 = vector.shape_cast %126 : vector<1x1x32xf32> to vector<1x32xf32>
    %128 = arith.addf %125, %127 : vector<1x32xf32>
    %cst_106 = arith.constant 0.000000e+00 : f32
    %129 = vector.broadcast %cst_106 : f32 to vector<1x32xf32>
    %130 = arith.maximumf %128, %129 : vector<1x32xf32>
    %131 = vector.extract_strided_slice %120 {offsets = [0, 64], sizes = [1, 64], strides = [1, 1]} : vector<1x192xf32> to vector<1x64xf32>
    %132 = arith.truncf %131 : vector<1x64xf32> to vector<1x64xbf16>
    %c1 = arith.constant 1 : index
    %c0_107 = arith.constant 0 : index
    %c0_108 = arith.constant 0 : index
    %133 = vector.load %arg20[%c1, %c0_107, %c0_108] : memref<3x64x32xbf16, #tpu.memory_space<vmem>>, vector<1x64x32xbf16>
    %134 = vector.shape_cast %133 : vector<1x64x32xbf16> to vector<64x32xbf16>
    %cst_109 = arith.constant dense<0.000000e+00> : vector<1x32xf32>
    %135 = tpu.matmul %132, %134, %cst_109 {dimension_numbers = #tpu.dot_dimension_numbers<[1], [0], [0], [1], [0, 0, 1, 1], [], []>} : vector<1x64xbf16>, vector<64x32xbf16>, vector<1x32xf32> -> vector<1x32xf32>
    %c1_110 = arith.constant 1 : index
    %c0_111 = arith.constant 0 : index
    %c0_112 = arith.constant 0 : index
    %136 = vector.load %arg21[%c1_110, %c0_111, %c0_112] : memref<3x1x32xf32, #tpu.memory_space<vmem>>, vector<1x1x32xf32>
    %137 = vector.shape_cast %136 : vector<1x1x32xf32> to vector<1x32xf32>
    %138 = arith.addf %135, %137 : vector<1x32xf32>
    %cst_113 = arith.constant 0.000000e+00 : f32
    %139 = vector.broadcast %cst_113 : f32 to vector<1x32xf32>
    %140 = arith.maximumf %138, %139 : vector<1x32xf32>
    %141 = vector.extract_strided_slice %120 {offsets = [0, 128], sizes = [1, 64], strides = [1, 1]} : vector<1x192xf32> to vector<1x64xf32>
    %142 = arith.truncf %141 : vector<1x64xf32> to vector<1x64xbf16>
    %c2 = arith.constant 2 : index
    %c0_114 = arith.constant 0 : index
    %c0_115 = arith.constant 0 : index
    %143 = vector.load %arg20[%c2, %c0_114, %c0_115] : memref<3x64x32xbf16, #tpu.memory_space<vmem>>, vector<1x64x32xbf16>
    %144 = vector.shape_cast %143 : vector<1x64x32xbf16> to vector<64x32xbf16>
    %cst_116 = arith.constant dense<0.000000e+00> : vector<1x32xf32>
    %145 = tpu.matmul %142, %144, %cst_116 {dimension_numbers = #tpu.dot_dimension_numbers<[1], [0], [0], [1], [0, 0, 1, 1], [], []>} : vector<1x64xbf16>, vector<64x32xbf16>, vector<1x32xf32> -> vector<1x32xf32>
    %c2_117 = arith.constant 2 : index
    %c0_118 = arith.constant 0 : index
    %c0_119 = arith.constant 0 : index
    %146 = vector.load %arg21[%c2_117, %c0_118, %c0_119] : memref<3x1x32xf32, #tpu.memory_space<vmem>>, vector<1x1x32xf32>
    %147 = vector.shape_cast %146 : vector<1x1x32xf32> to vector<1x32xf32>
    %148 = arith.addf %145, %147 : vector<1x32xf32>
    %cst_120 = arith.constant 0.000000e+00 : f32
    %149 = vector.broadcast %cst_120 : f32 to vector<1x32xf32>
    %150 = arith.maximumf %148, %149 : vector<1x32xf32>
    %151 = tpu.concatenate %130, %140, %150 in 1 : vector<1x32xf32>, vector<1x32xf32>, vector<1x32xf32> -> vector<1x96xf32>
    %152 = arith.truncf %151 : vector<1x96xf32> to vector<1x96xbf16>
    %c0_121 = arith.constant 0 : index
    %c0_122 = arith.constant 0 : index
    %153 = vector.load %arg22[%c0_121, %c0_122] : memref<96x3xbf16, #tpu.memory_space<vmem>>, vector<96x3xbf16>
    %cst_123 = arith.constant dense<0.000000e+00> : vector<1x3xf32>
    %154 = tpu.matmul %152, %153, %cst_123 {dimension_numbers = #tpu.dot_dimension_numbers<[1], [0], [0], [1], [0, 0, 1, 1], [], []>} : vector<1x96xbf16>, vector<96x3xbf16>, vector<1x3xf32> -> vector<1x3xf32>
    %c0_124 = arith.constant 0 : index
    %c0_125 = arith.constant 0 : index
    %155 = vector.load %arg23[%c0_124, %c0_125] : memref<1x3xf32, #tpu.memory_space<vmem>>, vector<1x3xf32>
    %156 = arith.addf %154, %155 : vector<1x3xf32>
    %c0_126 = arith.constant 0 : index
    %c0_127 = arith.constant 0 : index
    %c0_128 = arith.constant 0 : index
    %157 = vector.load %arg24[%c0_126, %c0_127, %c0_128] : memref<1x1x3xf32, #tpu.memory_space<vmem>>, vector<1x1x3xf32>
    %158 = vector.shape_cast %157 : vector<1x1x3xf32> to vector<1x3xf32>
    %159 = vector.shape_cast %156 : vector<1x3xf32> to vector<1x1x3xf32>
    tpu.vector_store %arg24[%c0_126, %c0_127, %c0_128], %159 {strides = array<i32>} : memref<1x1x3xf32, #tpu.memory_space<vmem>>, vector<1x1x3xf32>,
    return
  }
  func.func @transform_0(%arg0: i32) -> (i32, i32, i32) {
    %c0_i32 = arith.constant 0 : i32
    %c0_i32_0 = arith.constant 0 : i32
    %c0_i32_1 = arith.constant 0 : i32
    return %arg0, %c0_i32, %c0_i32_0 : i32, i32, i32
  }
  func.func @transform_1(%arg0: i32) -> (i32, i32) {
    %c0_i32 = arith.constant 0 : i32
    %c0_i32_0 = arith.constant 0 : i32
    %c0_i32_1 = arith.constant 0 : i32
    return %c0_i32, %c0_i32_0 : i32, i32
  }
  func.func @transform_2(%arg0: i32) -> (i32, i32) {
    %c0_i32 = arith.constant 0 : i32
    %c0_i32_0 = arith.constant 0 : i32
    %c0_i32_1 = arith.constant 0 : i32
    return %c0_i32, %c0_i32_0 : i32, i32
  }
  func.func @transform_3(%arg0: i32) -> (i32, i32) {
    %c0_i32 = arith.constant 0 : i32
    %c0_i32_0 = arith.constant 0 : i32
    %c0_i32_1 = arith.constant 0 : i32
    return %c0_i32, %c0_i32_0 : i32, i32
  }
  func.func @transform_4(%arg0: i32) -> (i32, i32) {
    %c0_i32 = arith.constant 0 : i32
    %c0_i32_0 = arith.constant 0 : i32
    %c0_i32_1 = arith.constant 0 : i32
    return %c0_i32, %c0_i32_0 : i32, i32
  }
  func.func @transform_5(%arg0: i32) -> (i32, i32) {
    %c0_i32 = arith.constant 0 : i32
    %c0_i32_0 = arith.constant 0 : i32
    %c0_i32_1 = arith.constant 0 : i32
    return %c0_i32, %c0_i32_0 : i32, i32
  }
  func.func @transform_6(%arg0: i32) -> (i32, i32) {
    %c0_i32 = arith.constant 0 : i32
    %c0_i32_0 = arith.constant 0 : i32
    %c0_i32_1 = arith.constant 0 : i32
    return %c0_i32, %c0_i32_0 : i32, i32
  }
  func.func @transform_7(%arg0: i32) -> (i32, i32) {
    %c0_i32 = arith.constant 0 : i32
    %c0_i32_0 = arith.constant 0 : i32
    %c0_i32_1 = arith.constant 0 : i32
    return %c0_i32, %c0_i32_0 : i32, i32
  }
  func.func @transform_8(%arg0: i32) -> (i32, i32) {
    %c0_i32 = arith.constant 0 : i32
    %c0_i32_0 = arith.constant 0 : i32
    %c0_i32_1 = arith.constant 0 : i32
    return %c0_i32, %c0_i32_0 : i32, i32
  }
  func.func @transform_9(%arg0: i32) -> (i32, i32) {
    %c0_i32 = arith.constant 0 : i32
    %c0_i32_0 = arith.constant 0 : i32
    %c0_i32_1 = arith.constant 0 : i32
    return %c0_i32, %c0_i32_0 : i32, i32
  }
  func.func @transform_10(%arg0: i32) -> (i32, i32) {
    %c0_i32 = arith.constant 0 : i32
    %c0_i32_0 = arith.constant 0 : i32
    %c0_i32_1 = arith.constant 0 : i32
    return %c0_i32, %c0_i32_0 : i32, i32
  }
  func.func @transform_11(%arg0: i32) -> (i32, i32) {
    %c0_i32 = arith.constant 0 : i32
    %c0_i32_0 = arith.constant 0 : i32
    %c0_i32_1 = arith.constant 0 : i32
    return %c0_i32, %c0_i32_0 : i32, i32
  }
  func.func @transform_12(%arg0: i32) -> (i32, i32) {
    %c0_i32 = arith.constant 0 : i32
    %c0_i32_0 = arith.constant 0 : i32
    %c0_i32_1 = arith.constant 0 : i32
    return %c0_i32, %c0_i32_0 : i32, i32
  }
  func.func @transform_13(%arg0: i32) -> (i32, i32) {
    %c0_i32 = arith.constant 0 : i32
    %c0_i32_0 = arith.constant 0 : i32
    %c0_i32_1 = arith.constant 0 : i32
    return %c0_i32, %c0_i32_0 : i32, i32
  }
  func.func @transform_14(%arg0: i32) -> (i32, i32) {
    %c0_i32 = arith.constant 0 : i32
    %c0_i32_0 = arith.constant 0 : i32
    %c0_i32_1 = arith.constant 0 : i32
    return %c0_i32, %c0_i32_0 : i32, i32
  }
  func.func @transform_15(%arg0: i32) -> (i32, i32) {
    %c0_i32 = arith.constant 0 : i32
    %c0_i32_0 = arith.constant 0 : i32
    %c0_i32_1 = arith.constant 0 : i32
    return %c0_i32, %c0_i32_0 : i32, i32
  }
  func.func @transform_16(%arg0: i32) -> (i32, i32) {
    %c0_i32 = arith.constant 0 : i32
    %c0_i32_0 = arith.constant 0 : i32
    %c0_i32_1 = arith.constant 0 : i32
    return %c0_i32, %c0_i32_0 : i32, i32
  }
  func.func @transform_17(%arg0: i32) -> (i32, i32) {
    %c0_i32 = arith.constant 0 : i32
    %c0_i32_0 = arith.constant 0 : i32
    %c0_i32_1 = arith.constant 0 : i32
    return %c0_i32, %c0_i32_0 : i32, i32
  }
  func.func @transform_18(%arg0: i32) -> (i32, i32) {
    %c0_i32 = arith.constant 0 : i32
    %c0_i32_0 = arith.constant 0 : i32
    %c0_i32_1 = arith.constant 0 : i32
    return %c0_i32, %c0_i32_0 : i32, i32
  }
  func.func @transform_19(%arg0: i32) -> (i32, i32, i32) {
    %c0_i32 = arith.constant 0 : i32
    %c0_i32_0 = arith.constant 0 : i32
    %c0_i32_1 = arith.constant 0 : i32
    %c0_i32_2 = arith.constant 0 : i32
    return %c0_i32, %c0_i32_0, %c0_i32_1 : i32, i32, i32
  }
  func.func @transform_20(%arg0: i32) -> (i32, i32, i32) {
    %c0_i32 = arith.constant 0 : i32
    %c0_i32_0 = arith.constant 0 : i32
    %c0_i32_1 = arith.constant 0 : i32
    %c0_i32_2 = arith.constant 0 : i32
    return %c0_i32, %c0_i32_0, %c0_i32_1 : i32, i32, i32
  }
  func.func @transform_21(%arg0: i32) -> (i32, i32) {
    %c0_i32 = arith.constant 0 : i32
    %c0_i32_0 = arith.constant 0 : i32
    %c0_i32_1 = arith.constant 0 : i32
    return %c0_i32, %c0_i32_0 : i32, i32
  }
  func.func @transform_22(%arg0: i32) -> (i32, i32) {
    %c0_i32 = arith.constant 0 : i32
    %c0_i32_0 = arith.constant 0 : i32
    %c0_i32_1 = arith.constant 0 : i32
    return %c0_i32, %c0_i32_0 : i32, i32
  }
  func.func @transform_23(%arg0: i32) -> (i32, i32, i32) {
    %c0_i32 = arith.constant 0 : i32
    %c0_i32_0 = arith.constant 0 : i32
    %c0_i32_1 = arith.constant 0 : i32
    return %arg0, %c0_i32, %c0_i32_0 : i32, i32, i32
  }
}

</mosaic_0001>

<llo_original>
// kernel: tcnse_mtl_forward.1
$region0: #{tcnse_mtl_forward.1}
  #allocation0 [shape = 'u32[]', space=smem, size = 0x4, offset = 0x4, fixed_abs, tag = 'smem constant byte address 0x4 - core index']
  #allocation1 [shape = 'u32[72,128]{1,0:T(1,128)}', space=vmem, size = 0x9000, scoped, tag = 'internal scratch']
  #allocation2 [shape = 'f32[24,32]{1,0:T(8,128)}', space=vmem, size = 0x3000, scoped, tag = 'scratch operand']
  %s0 = inlined_call_operand.vmem [shape: f32[2,16,4], index: 0, kind: input, shape index: {}]
  %s1 = inlined_call_operand.vmem [shape: bf16[12,32], index: 1, kind: input, shape index: {}]
  %s2 = inlined_call_operand.vmem [shape: f32[1,32], index: 2, kind: input, shape index: {}]
  %s3 = inlined_call_operand.vmem [shape: bf16[96,32], index: 3, kind: input, shape index: {}]
  %s4 = inlined_call_operand.vmem [shape: f32[1,32], index: 4, kind: input, shape index: {}]
  %s5 = inlined_call_operand.vmem [shape: bf16[4,32], index: 5, kind: input, shape index: {}]
  %s6 = inlined_call_operand.vmem [shape: f32[1,32], index: 6, kind: input, shape index: {}]
  %s7 = inlined_call_operand.vmem [shape: f32[32,2], index: 7, kind: input, shape index: {}]
  %s8 = inlined_call_operand.vmem [shape: f32[2,32], index: 8, kind: input, shape index: {}]
  %s9 = inlined_call_operand.vmem [shape: bf16[96,32], index: 9, kind: input, shape index: {}]
  %s10 = inlined_call_operand.vmem [shape: f32[1,32], index: 10, kind: input, shape index: {}]
  %s11 = inlined_call_operand.vmem [shape: bf16[96,32], index: 11, kind: input, shape index: {}]
  %s12 = inlined_call_operand.vmem [shape: f32[1,32], index: 12, kind: input, shape index: {}]
  %s13 = inlined_call_operand.vmem [shape: f32[32,2], index: 13, kind: input, shape index: {}]
  %s14 = inlined_call_operand.vmem [shape: f32[2,32], index: 14, kind: input, shape index: {}]
  %s15 = inlined_call_operand.vmem [shape: bf16[32,128], index: 15, kind: input, shape index: {}]
  %s16 = inlined_call_operand.vmem [shape: f32[1,128], index: 16, kind: input, shape index: {}]
  %s17 = inlined_call_operand.vmem [shape: bf16[128,192], index: 17, kind: input, shape index: {}]
  %s18 = inlined_call_operand.vmem [shape: f32[1,192], index: 18, kind: input, shape index: {}]
  %s19 = inlined_call_operand.vmem [shape: bf16[3,64,32], index: 19, kind: input, shape index: {}]
  %s20 = inlined_call_operand.vmem [shape: f32[3,1,32], index: 20, kind: input, shape index: {}]
  %s21 = inlined_call_operand.vmem [shape: bf16[96,3], index: 21, kind: input, shape index: {}]
  %s22 = inlined_call_operand.vmem [shape: f32[1,3], index: 22, kind: input, shape index: {}]
  %s23 = inlined_call_operand.hbm [shape: f32[2,1,3], index: 23, kind: output, shape index: {}]
  %s24 = sld [smem:[#allocation0]]
  $region125: #{tcnse_mtl_forward.1} parent=0
    _
  %s26 = ssub.s32 1, %s24
  %s27 = scalar_select 0, %s26, %s24
  $region1: #{tcnse_mtl_forward.1} parent=0
    #allocation3 [shape = 'u8[1024]{0}', space=vmem, size = 0x400, scoped, tag = 'output window, operand 0']
    #allocation4 [shape = 's32[2]{0}', space=sflag, size = 0x8, scoped, tag = 'scoped memory for tcnse_mtl_forward.1']
    %28 = vsyncpa [#allocation4], 0
    %s29 = scalar_lea.sflag [#allocation4], 1
    %30 = vsyncpa %s29, 0
    loop: start=0, step=1, limit=4
    $region2: #{tcnse_mtl_forward.1} parent=1 // loop_pre_header
      _
    $region3: #{tcnse_mtl_forward.1} parent=1 // loop_header
      %s32 = sphi 0, %s36
      %p33 = scmp.ge.s32.totalorder %s32, 4
      %s42 = sphi 0, %s44
      %s45 = sphi 0, %s42
      %s46 = sphi 0, %s45
      %s62 = sphi 0, %s46
      %s66 = sphi 0, %s66
      %s68 = sphi 0, %s66
      %s69 = sphi 0, %s68
      %s83 = sphi 0, %s69
      %s87 = sphi 0, %s87
      %s89 = sphi 0, %s87
      %s90 = sphi 0, %s89
      %s104 = sphi 0, %s90
      %s108 = sphi 0, %s108
      %s110 = sphi 0, %s108
      %s111 = sphi 0, %s110
      %s125 = sphi 0, %s111
      %s129 = sphi 0, %s129
      %s131 = sphi 0, %s129
      %s132 = sphi 0, %s131
      %s146 = sphi 0, %s132
      %s150 = sphi 0, %s150
      %s152 = sphi 0, %s150
      %s153 = sphi 0, %s152
      %s167 = sphi 0, %s153
      %s171 = sphi 0, %s171
      %s173 = sphi 0, %s171
      %s174 = sphi 0, %s173
      %s188 = sphi 0, %s174
      %s192 = sphi 0, %s192
      %s194 = sphi 0, %s192
      %s195 = sphi 0, %s194
      %s209 = sphi 0, %s195
      %s213 = sphi 0, %s213
      %s215 = sphi 0, %s213
      %s216 = sphi 0, %s215
      %s230 = sphi 0, %s216
      %s234 = sphi 0, %s234
      %s236 = sphi 0, %s234
      %s237 = sphi 0, %s236
      %s251 = sphi 0, %s237
      %s255 = sphi 0, %s255
      %s257 = sphi 0, %s255
      %s258 = sphi 0, %s257
      %s272 = sphi 0, %s258
      %s276 = sphi 0, %s276
      %s278 = sphi 0, %s276
      %s279 = sphi 0, %s278
      %s293 = sphi 0, %s279
      %s297 = sphi 0, %s297
      %s299 = sphi 0, %s297
      %s300 = sphi 0, %s299
      %s314 = sphi 0, %s300
      %s318 = sphi 0, %s318
      %s320 = sphi 0, %s318
      %s321 = sphi 0, %s320
      %s335 = sphi 0, %s321
      %s339 = sphi 0, %s339
      %s341 = sphi 0, %s339
      %s342 = sphi 0, %s341
      %s356 = sphi 0, %s342
      %s360 = sphi 0, %s360
      %s362 = sphi 0, %s360
      %s363 = sphi 0, %s362
      %s377 = sphi 0, %s363
      %s381 = sphi 0, %s381
      %s383 = sphi 0, %s381
      %s384 = sphi 0, %s383
      %s398 = sphi 0, %s384
      %s402 = sphi 0, %s402
      %s404 = sphi 0, %s402
      %s405 = sphi 0, %s404
      %s419 = sphi 0, %s405
      %s423 = sphi 0, %s423
      %s425 = sphi 0, %s423
      %s426 = sphi 0, %s425
      %s440 = sphi 0, %s426
      %s444 = sphi 0, %s444
      %s446 = sphi 0, %s444
      %s447 = sphi 0, %s446
      %s461 = sphi 0, %s447
      %s465 = sphi 0, %s465
      %s467 = sphi 0, %s465
      %s468 = sphi 0, %s467
      %s482 = sphi 0, %s468
      %s486 = sphi 0, %s486
      %s488 = sphi 0, %s486
      %s489 = sphi 0, %s488
      %s503 = sphi 0, %s489
      %s507 = sphi 0, %s507
      %s509 = sphi 0, %s507
      %s510 = sphi 0, %s509
      %s524 = sphi 0, %s510
      %s530 = sphi 0, %s532
      %s533 = sphi 0, %s530
      %s534 = sphi 0, %s533
      %s550 = sphi 0, %s534
    $region4: #{tcnse_mtl_forward.1} parent=1 // loop_header_branch
      %35 = sbr.rel (%p33) target = $region8
    $region5: #{tcnse_mtl_forward.1} parent=1 // loop_body
      %s37 = ssub.s32 %s32, 1
      %s38 = ssub.s32 %s32, 2
      %s39 = sadd.s32 %s32, 1
      %s40 = ssub.s32 %s32, %s39
      %p41 = scmp.eq.s32.totalorder %s40, 0
      %s43 = sadd.s32 %s42, 1
      %s44 = scalar_select %p41, %s42, %s43
      %p47 = pneg %p41
      %p48 = scmp.eq.s32.totalorder %s32, 1
      %p49 = por %p47, %p48
      %p50 = scmp.ne.s32.totalorder %s42, %s45
      %p51 = scmp.eq.s32.totalorder %s32, 0
      %p52 = por %p50, %p51
      %p53 = scmp.ne.s32.totalorder %s42, %s45
      %p54 = scmp.eq.s32.totalorder %s37, 1
      %p55 = por %p53, %p54
      %p56 = scmp.ne.s32.totalorder %s45, %s46
      %p57 = scmp.eq.s32.totalorder %s37, 0
      %p58 = por %p56, %p57
      %p59 = scmp.ne.s32.totalorder %s45, %s46
      %p60 = scmp.eq.s32.totalorder %s38, 1
      %p61 = por %p59, %p60
      %p63 = scmp.ne.s32.totalorder %s46, %s62
      %p64 = scmp.eq.s32.totalorder %s38, 0
      %p65 = por %p63, %p64
      %s67 = sadd.s32 %s66, 1
      %p70 = scmp.eq.s32.totalorder %s32, 1
      %p71 = scmp.ne.s32.totalorder %s66, %s68
      %p72 = scmp.eq.s32.totalorder %s32, 0
      %p73 = por %p71, %p72
      %p74 = scmp.ne.s32.totalorder %s66, %s68
      %p75 = scmp.eq.s32.totalorder %s37, 1
      %p76 = por %p74, %p75
      %p77 = scmp.ne.s32.totalorder %s68, %s69
      %p78 = scmp.eq.s32.totalorder %s37, 0
      %p79 = por %p77, %p78
      %p80 = scmp.ne.s32.totalorder %s68, %s69
      %p81 = scmp.eq.s32.totalorder %s38, 1
      %p82 = por %p80, %p81
      %p84 = scmp.ne.s32.totalorder %s69, %s83
      %p85 = scmp.eq.s32.totalorder %s38, 0
      %p86 = por %p84, %p85
      %s88 = sadd.s32 %s87, 1
      %p91 = scmp.eq.s32.totalorder %s32, 1
      %p92 = scmp.ne.s32.totalorder %s87, %s89
      %p93 = scmp.eq.s32.totalorder %s32, 0
      %p94 = por %p92, %p93
      %p95 = scmp.ne.s32.totalorder %s87, %s89
      %p96 = scmp.eq.s32.totalorder %s37, 1
      %p97 = por %p95, %p96
      %p98 = scmp.ne.s32.totalorder %s89, %s90
      %p99 = scmp.eq.s32.totalorder %s37, 0
      %p100 = por %p98, %p99
      %p101 = scmp.ne.s32.totalorder %s89, %s90
      %p102 = scmp.eq.s32.totalorder %s38, 1
      %p103 = por %p101, %p102
      %p105 = scmp.ne.s32.totalorder %s90, %s104
      %p106 = scmp.eq.s32.totalorder %s38, 0
      %p107 = por %p105, %p106
      %s109 = sadd.s32 %s108, 1
      %p112 = scmp.eq.s32.totalorder %s32, 1
      %p113 = scmp.ne.s32.totalorder %s108, %s110
      %p114 = scmp.eq.s32.totalorder %s32, 0
      %p115 = por %p113, %p114
      %p116 = scmp.ne.s32.totalorder %s108, %s110
      %p117 = scmp.eq.s32.totalorder %s37, 1
      %p118 = por %p116, %p117
      %p119 = scmp.ne.s32.totalorder %s110, %s111
      %p120 = scmp.eq.s32.totalorder %s37, 0
      %p121 = por %p119, %p120
      %p122 = scmp.ne.s32.totalorder %s110, %s111
      %p123 = scmp.eq.s32.totalorder %s38, 1
      %p124 = por %p122, %p123
      %p126 = scmp.ne.s32.totalorder %s111, %s125
      %p127 = scmp.eq.s32.totalorder %s38, 0
      %p128 = por %p126, %p127
      %s130 = sadd.s32 %s129, 1
      %p133 = scmp.eq.s32.totalorder %s32, 1
      %p134 = scmp.ne.s32.totalorder %s129, %s131
      %p135 = scmp.eq.s32.totalorder %s32, 0
      %p136 = por %p134, %p135
      %p137 = scmp.ne.s32.totalorder %s129, %s131
      %p138 = scmp.eq.s32.totalorder %s37, 1
      %p139 = por %p137, %p138
      %p140 = scmp.ne.s32.totalorder %s131, %s132
      %p141 = scmp.eq.s32.totalorder %s37, 0
      %p142 = por %p140, %p141
      %p143 = scmp.ne.s32.totalorder %s131, %s132
      %p144 = scmp.eq.s32.totalorder %s38, 1
      %p145 = por %p143, %p144
      %p147 = scmp.ne.s32.totalorder %s132, %s146
      %p148 = scmp.eq.s32.totalorder %s38, 0
      %p149 = por %p147, %p148
      %s151 = sadd.s32 %s150, 1
      %p154 = scmp.eq.s32.totalorder %s32, 1
      %p155 = scmp.ne.s32.totalorder %s150, %s152
      %p156 = scmp.eq.s32.totalorder %s32, 0
      %p157 = por %p155, %p156
      %p158 = scmp.ne.s32.totalorder %s150, %s152
      %p159 = scmp.eq.s32.totalorder %s37, 1
      %p160 = por %p158, %p159
      %p161 = scmp.ne.s32.totalorder %s152, %s153
      %p162 = scmp.eq.s32.totalorder %s37, 0
      %p163 = por %p161, %p162
      %p164 = scmp.ne.s32.totalorder %s152, %s153
      %p165 = scmp.eq.s32.totalorder %s38, 1
      %p166 = por %p164, %p165
      %p168 = scmp.ne.s32.totalorder %s153, %s167
      %p169 = scmp.eq.s32.totalorder %s38, 0
      %p170 = por %p168, %p169
      %s172 = sadd.s32 %s171, 1
      %p175 = scmp.eq.s32.totalorder %s32, 1
      %p176 = scmp.ne.s32.totalorder %s171, %s173
      %p177 = scmp.eq.s32.totalorder %s32, 0
      %p178 = por %p176, %p177
      %p179 = scmp.ne.s32.totalorder %s171, %s173
      %p180 = scmp.eq.s32.totalorder %s37, 1
      %p181 = por %p179, %p180
      %p182 = scmp.ne.s32.totalorder %s173, %s174
      %p183 = scmp.eq.s32.totalorder %s37, 0
      %p184 = por %p182, %p183
      %p185 = scmp.ne.s32.totalorder %s173, %s174
      %p186 = scmp.eq.s32.totalorder %s38, 1
      %p187 = por %p185, %p186
      %p189 = scmp.ne.s32.totalorder %s174, %s188
      %p190 = scmp.eq.s32.totalorder %s38, 0
      %p191 = por %p189, %p190
      %s193 = sadd.s32 %s192, 1
      %p196 = scmp.eq.s32.totalorder %s32, 1
      %p197 = scmp.ne.s32.totalorder %s192, %s194
      %p198 = scmp.eq.s32.totalorder %s32, 0
      %p199 = por %p197, %p198
      %p200 = scmp.ne.s32.totalorder %s192, %s194
      %p201 = scmp.eq.s32.totalorder %s37, 1
      %p202 = por %p200, %p201
      %p203 = scmp.ne.s32.totalorder %s194, %s195
      %p204 = scmp.eq.s32.totalorder %s37, 0
      %p205 = por %p203, %p204
      %p206 = scmp.ne.s32.totalorder %s194, %s195
      %p207 = scmp.eq.s32.totalorder %s38, 1
      %p208 = por %p206, %p207
      %p210 = scmp.ne.s32.totalorder %s195, %s209
      %p211 = scmp.eq.s32.totalorder %s38, 0
      %p212 = por %p210, %p211
      %s214 = sadd.s32 %s213, 1
      %p217 = scmp.eq.s32.totalorder %s32, 1
      %p218 = scmp.ne.s32.totalorder %s213, %s215
      %p219 = scmp.eq.s32.totalorder %s32, 0
      %p220 = por %p218, %p219
      %p221 = scmp.ne.s32.totalorder %s213, %s215
      %p222 = scmp.eq.s32.totalorder %s37, 1
      %p223 = por %p221, %p222
      %p224 = scmp.ne.s32.totalorder %s215, %s216
      %p225 = scmp.eq.s32.totalorder %s37, 0
      %p226 = por %p224, %p225
      %p227 = scmp.ne.s32.totalorder %s215, %s216
      %p228 = scmp.eq.s32.totalorder %s38, 1
      %p229 = por %p227, %p228
      %p231 = scmp.ne.s32.totalorder %s216, %s230
      %p232 = scmp.eq.s32.totalorder %s38, 0
      %p233 = por %p231, %p232
      %s235 = sadd.s32 %s234, 1
      %p238 = scmp.eq.s32.totalorder %s32, 1
      %p239 = scmp.ne.s32.totalorder %s234, %s236
      %p240 = scmp.eq.s32.totalorder %s32, 0
      %p241 = por %p239, %p240
      %p242 = scmp.ne.s32.totalorder %s234, %s236
      %p243 = scmp.eq.s32.totalorder %s37, 1
      %p244 = por %p242, %p243
      %p245 = scmp.ne.s32.totalorder %s236, %s237
      %p246 = scmp.eq.s32.totalorder %s37, 0
      %p247 = por %p245, %p246
      %p248 = scmp.ne.s32.totalorder %s236, %s237
      %p249 = scmp.eq.s32.totalorder %s38, 1
      %p250 = por %p248, %p249
      %p252 = scmp.ne.s32.totalorder %s237, %s251
      %p253 = scmp.eq.s32.totalorder %s38, 0
      %p254 = por %p252, %p253
      %s256 = sadd.s32 %s255, 1
      %p259 = scmp.eq.s32.totalorder %s32, 1
      %p260 = scmp.ne.s32.totalorder %s255, %s257
      %p261 = scmp.eq.s32.totalorder %s32, 0
      %p262 = por %p260, %p261
      %p263 = scmp.ne.s32.totalorder %s255, %s257
      %p264 = scmp.eq.s32.totalorder %s37, 1
      %p265 = por %p263, %p264
      %p266 = scmp.ne.s32.totalorder %s257, %s258
      %p267 = scmp.eq.s32.totalorder %s37, 0
      %p268 = por %p266, %p267
      %p269 = scmp.ne.s32.totalorder %s257, %s258
      %p270 = scmp.eq.s32.totalorder %s38, 1
      %p271 = por %p269, %p270
      %p273 = scmp.ne.s32.totalorder %s258, %s272
      %p274 = scmp.eq.s32.totalorder %s38, 0
      %p275 = por %p273, %p274
      %s277 = sadd.s32 %s276, 1
      %p280 = scmp.eq.s32.totalorder %s32, 1
      %p281 = scmp.ne.s32.totalorder %s276, %s278
      %p282 = scmp.eq.s32.totalorder %s32, 0
      %p283 = por %p281, %p282
      %p284 = scmp.ne.s32.totalorder %s276, %s278
      %p285 = scmp.eq.s32.totalorder %s37, 1
      %p286 = por %p284, %p285
      %p287 = scmp.ne.s32.totalorder %s278, %s279
      %p288 = scmp.eq.s32.totalorder %s37, 0
      %p289 = por %p287, %p288
      %p290 = scmp.ne.s32.totalorder %s278, %s279
      %p291 = scmp.eq.s32.totalorder %s38, 1
      %p292 = por %p290, %p291
      %p294 = scmp.ne.s32.totalorder %s279, %s293
      %p295 = scmp.eq.s32.totalorder %s38, 0
      %p296 = por %p294, %p295
      %s298 = sadd.s32 %s297, 1
      %p301 = scmp.eq.s32.totalorder %s32, 1
      %p302 = scmp.ne.s32.totalorder %s297, %s299
      %p303 = scmp.eq.s32.totalorder %s32, 0
      %p304 = por %p302, %p303
      %p305 = scmp.ne.s32.totalorder %s297, %s299
      %p306 = scmp.eq.s32.totalorder %s37, 1
      %p307 = por %p305, %p306
      %p308 = scmp.ne.s32.totalorder %s299, %s300
      %p309 = scmp.eq.s32.totalorder %s37, 0
      %p310 = por %p308, %p309
      %p311 = scmp.ne.s32.totalorder %s299, %s300
      %p312 = scmp.eq.s32.totalorder %s38, 1
      %p313 = por %p311, %p312
      %p315 = scmp.ne.s32.totalorder %s300, %s314
      %p316 = scmp.eq.s32.totalorder %s38, 0
      %p317 = por %p315, %p316
      %s319 = sadd.s32 %s318, 1
      %p322 = scmp.eq.s32.totalorder %s32, 1
      %p323 = scmp.ne.s32.totalorder %s318, %s320
      %p324 = scmp.eq.s32.totalorder %s32, 0
      %p325 = por %p323, %p324
      %p326 = scmp.ne.s32.totalorder %s318, %s320
      %p327 = scmp.eq.s32.totalorder %s37, 1
      %p328 = por %p326, %p327
      %p329 = scmp.ne.s32.totalorder %s320, %s321
      %p330 = scmp.eq.s32.totalorder %s37, 0
      %p331 = por %p329, %p330
      %p332 = scmp.ne.s32.totalorder %s320, %s321
      %p333 = scmp.eq.s32.totalorder %s38, 1
      %p334 = por %p332, %p333
      %p336 = scmp.ne.s32.totalorder %s321, %s335
      %p337 = scmp.eq.s32.totalorder %s38, 0
      %p338 = por %p336, %p337
      %s340 = sadd.s32 %s339, 1
      %p343 = scmp.eq.s32.totalorder %s32, 1
      %p344 = scmp.ne.s32.totalorder %s339, %s341
      %p345 = scmp.eq.s32.totalorder %s32, 0
      %p346 = por %p344, %p345
      %p347 = scmp.ne.s32.totalorder %s339, %s341
      %p348 = scmp.eq.s32.totalorder %s37, 1
      %p349 = por %p347, %p348
      %p350 = scmp.ne.s32.totalorder %s341, %s342
      %p351 = scmp.eq.s32.totalorder %s37, 0
      %p352 = por %p350, %p351
      %p353 = scmp.ne.s32.totalorder %s341, %s342
      %p354 = scmp.eq.s32.totalorder %s38, 1
      %p355 = por %p353, %p354
      %p357 = scmp.ne.s32.totalorder %s342, %s356
      %p358 = scmp.eq.s32.totalorder %s38, 0
      %p359 = por %p357, %p358
      %s361 = sadd.s32 %s360, 1
      %p364 = scmp.eq.s32.totalorder %s32, 1
      %p365 = scmp.ne.s32.totalorder %s360, %s362
      %p366 = scmp.eq.s32.totalorder %s32, 0
      %p367 = por %p365, %p366
      %p368 = scmp.ne.s32.totalorder %s360, %s362
      %p369 = scmp.eq.s32.totalorder %s37, 1
      %p370 = por %p368, %p369
      %p371 = scmp.ne.s32.totalorder %s362, %s363
      %p372 = scmp.eq.s32.totalorder %s37, 0
      %p373 = por %p371, %p372
      %p374 = scmp.ne.s32.totalorder %s362, %s363
      %p375 = scmp.eq.s32.totalorder %s38, 1
      %p376 = por %p374, %p375
      %p378 = scmp.ne.s32.totalorder %s363, %s377
      %p379 = scmp.eq.s32.totalorder %s38, 0
      %p380 = por %p378, %p379
      %s382 = sadd.s32 %s381, 1
      %p385 = scmp.eq.s32.totalorder %s32, 1
      %p386 = scmp.ne.s32.totalorder %s381, %s383
      %p387 = scmp.eq.s32.totalorder %s32, 0
      %p388 = por %p386, %p387
      %p389 = scmp.ne.s32.totalorder %s381, %s383
      %p390 = scmp.eq.s32.totalorder %s37, 1
      %p391 = por %p389, %p390
      %p392 = scmp.ne.s32.totalorder %s383, %s384
      %p393 = scmp.eq.s32.totalorder %s37, 0
      %p394 = por %p392, %p393
      %p395 = scmp.ne.s32.totalorder %s383, %s384
      %p396 = scmp.eq.s32.totalorder %s38, 1
      %p397 = por %p395, %p396
      %p399 = scmp.ne.s32.totalorder %s384, %s398
      %p400 = scmp.eq.s32.totalorder %s38, 0
      %p401 = por %p399, %p400
      %s403 = sadd.s32 %s402, 1
      %p406 = scmp.eq.s32.totalorder %s32, 1
      %p407 = scmp.ne.s32.totalorder %s402, %s404
      %p408 = scmp.eq.s32.totalorder %s32, 0
      %p409 = por %p407, %p408
      %p410 = scmp.ne.s32.totalorder %s402, %s404
      %p411 = scmp.eq.s32.totalorder %s37, 1
      %p412 = por %p410, %p411
      %p413 = scmp.ne.s32.totalorder %s404, %s405
      %p414 = scmp.eq.s32.totalorder %s37, 0
      %p415 = por %p413, %p414
      %p416 = scmp.ne.s32.totalorder %s404, %s405
      %p417 = scmp.eq.s32.totalorder %s38, 1
      %p418 = por %p416, %p417
      %p420 = scmp.ne.s32.totalorder %s405, %s419
      %p421 = scmp.eq.s32.totalorder %s38, 0
      %p422 = por %p420, %p421
      %s424 = sadd.s32 %s423, 1
      %p427 = scmp.eq.s32.totalorder %s32, 1
      %p428 = scmp.ne.s32.totalorder %s423, %s425
      %p429 = scmp.eq.s32.totalorder %s32, 0
      %p430 = por %p428, %p429
      %p431 = scmp.ne.s32.totalorder %s423, %s425
      %p432 = scmp.eq.s32.totalorder %s37, 1
      %p433 = por %p431, %p432
      %p434 = scmp.ne.s32.totalorder %s425, %s426
      %p435 = scmp.eq.s32.totalorder %s37, 0
      %p436 = por %p434, %p435
      %p437 = scmp.ne.s32.totalorder %s425, %s426
      %p438 = scmp.eq.s32.totalorder %s38, 1
      %p439 = por %p437, %p438
      %p441 = scmp.ne.s32.totalorder %s426, %s440
      %p442 = scmp.eq.s32.totalorder %s38, 0
      %p443 = por %p441, %p442
      %s445 = sadd.s32 %s444, 1
      %p448 = scmp.eq.s32.totalorder %s32, 1
      %p449 = scmp.ne.s32.totalorder %s444, %s446
      %p450 = scmp.eq.s32.totalorder %s32, 0
      %p451 = por %p449, %p450
      %p452 = scmp.ne.s32.totalorder %s444, %s446
      %p453 = scmp.eq.s32.totalorder %s37, 1
      %p454 = por %p452, %p453
      %p455 = scmp.ne.s32.totalorder %s446, %s447
      %p456 = scmp.eq.s32.totalorder %s37, 0
      %p457 = por %p455, %p456
      %p458 = scmp.ne.s32.totalorder %s446, %s447
      %p459 = scmp.eq.s32.totalorder %s38, 1
      %p460 = por %p458, %p459
      %p462 = scmp.ne.s32.totalorder %s447, %s461
      %p463 = scmp.eq.s32.totalorder %s38, 0
      %p464 = por %p462, %p463
      %s466 = sadd.s32 %s465, 1
      %p469 = scmp.eq.s32.totalorder %s32, 1
      %p470 = scmp.ne.s32.totalorder %s465, %s467
      %p471 = scmp.eq.s32.totalorder %s32, 0
      %p472 = por %p470, %p471
      %p473 = scmp.ne.s32.totalorder %s465, %s467
      %p474 = scmp.eq.s32.totalorder %s37, 1
      %p475 = por %p473, %p474
      %p476 = scmp.ne.s32.totalorder %s467, %s468
      %p477 = scmp.eq.s32.totalorder %s37, 0
      %p478 = por %p476, %p477
      %p479 = scmp.ne.s32.totalorder %s467, %s468
      %p480 = scmp.eq.s32.totalorder %s38, 1
      %p481 = por %p479, %p480
      %p483 = scmp.ne.s32.totalorder %s468, %s482
      %p484 = scmp.eq.s32.totalorder %s38, 0
      %p485 = por %p483, %p484
      %s487 = sadd.s32 %s486, 1
      %p490 = scmp.eq.s32.totalorder %s32, 1
      %p491 = scmp.ne.s32.totalorder %s486, %s488
      %p492 = scmp.eq.s32.totalorder %s32, 0
      %p493 = por %p491, %p492
      %p494 = scmp.ne.s32.totalorder %s486, %s488
      %p495 = scmp.eq.s32.totalorder %s37, 1
      %p496 = por %p494, %p495
      %p497 = scmp.ne.s32.totalorder %s488, %s489
      %p498 = scmp.eq.s32.totalorder %s37, 0
      %p499 = por %p497, %p498
      %p500 = scmp.ne.s32.totalorder %s488, %s489
      %p501 = scmp.eq.s32.totalorder %s38, 1
      %p502 = por %p500, %p501
      %p504 = scmp.ne.s32.totalorder %s489, %s503
      %p505 = scmp.eq.s32.totalorder %s38, 0
      %p506 = por %p504, %p505
      %s508 = sadd.s32 %s507, 1
      %p511 = scmp.eq.s32.totalorder %s32, 1
      %p512 = scmp.ne.s32.totalorder %s507, %s509
      %p513 = scmp.eq.s32.totalorder %s32, 0
      %p514 = por %p512, %p513
      %p515 = scmp.ne.s32.totalorder %s507, %s509
      %p516 = scmp.eq.s32.totalorder %s37, 1
      %p517 = por %p515, %p516
      %p518 = scmp.ne.s32.totalorder %s509, %s510
      %p519 = scmp.eq.s32.totalorder %s37, 0
      %p520 = por %p518, %p519
      %p521 = scmp.ne.s32.totalorder %s509, %s510
      %p522 = scmp.eq.s32.totalorder %s38, 1
      %p523 = por %p521, %p522
      %p525 = scmp.ne.s32.totalorder %s510, %s524
      %p526 = scmp.eq.s32.totalorder %s38, 0
      %p527 = por %p525, %p526
      %s528 = ssub.s32 %s32, %s39
      %p529 = scmp.eq.s32.totalorder %s528, 0
      %s531 = sadd.s32 %s530, 1
      %s532 = scalar_select %p529, %s530, %s531
      %p535 = pneg %p529
      %p536 = scmp.eq.s32.totalorder %s32, 1
      %p537 = por %p535, %p536
      %p538 = scmp.ne.s32.totalorder %s530, %s533
      %p539 = scmp.eq.s32.totalorder %s32, 0
      %p540 = por %p538, %p539
      %p541 = scmp.ne.s32.totalorder %s530, %s533
      %p542 = scmp.eq.s32.totalorder %s37, 1
      %p543 = por %p541, %p542
      %p544 = scmp.ne.s32.totalorder %s533, %s534
      %p545 = scmp.eq.s32.totalorder %s37, 0
      %p546 = por %p544, %p545
      %p547 = scmp.ne.s32.totalorder %s533, %s534
      %p548 = scmp.eq.s32.totalorder %s38, 1
      %p549 = por %p547, %p548
      %p551 = scmp.ne.s32.totalorder %s534, %s550
      %p552 = scmp.eq.s32.totalorder %s38, 0
      %p553 = por %p551, %p552
      %p554 = scmp.le.s32.totalorder 1, %s32
      %p555 = scmp.lt.s32.totalorder %s32, 3
      %p556 = pnand %p554, %p555
      %p557 = pneg %p556
      // Predicated region
      $region9: #{tcnse_mtl_forward.1} parent=5 // pred_check
        _
      $region10: #{tcnse_mtl_forward.1} parent=5 // pred_check_branch
        %559 = sbr.rel (%p556) target = $region12
      $region11: #{tcnse_mtl_forward.1} parent=5 // pred_region
        %s560 = ssub.s32 %s32, 1
        // Predicated region
        $region13: #{tcnse_mtl_forward.1} parent=11 // pred_check
          %p561 = pneg %p79
        $region14: #{tcnse_mtl_forward.1} parent=11 // pred_check_branch
          %563 = sbr.rel (%p561) target = $region16
        $region15: #{tcnse_mtl_forward.1} parent=11 // pred_region
          _
        $region16: #{tcnse_mtl_forward.1} parent=11 // pred_fallthru
          _
        // Predicated region
        $region17: #{tcnse_mtl_forward.1} parent=11 // pred_check
          %p564 = pneg %p100
        $region18: #{tcnse_mtl_forward.1} parent=11 // pred_check_branch
          %566 = sbr.rel (%p564) target = $region20
        $region19: #{tcnse_mtl_forward.1} parent=11 // pred_region
          _
        $region20: #{tcnse_mtl_forward.1} parent=11 // pred_fallthru
          _
        // Predicated region
        $region21: #{tcnse_mtl_forward.1} parent=11 // pred_check
          %p567 = pneg %p121
        $region22: #{tcnse_mtl_forward.1} parent=11 // pred_check_branch
          %569 = sbr.rel (%p567) target = $region24
        $region23: #{tcnse_mtl_forward.1} parent=11 // pred_region
          _
        $region24: #{tcnse_mtl_forward.1} parent=11 // pred_fallthru
          _
        // Predicated region
        $region25: #{tcnse_mtl_forward.1} parent=11 // pred_check
          %p570 = pneg %p142
        $region26: #{tcnse_mtl_forward.1} parent=11 // pred_check_branch
          %572 = sbr.rel (%p570) target = $region28
        $region27: #{tcnse_mtl_forward.1} parent=11 // pred_region
          _
        $region28: #{tcnse_mtl_forward.1} parent=11 // pred_fallthru
          _
        // Predicated region
        $region29: #{tcnse_mtl_forward.1} parent=11 // pred_check
          %p573 = pneg %p163
        $region30: #{tcnse_mtl_forward.1} parent=11 // pred_check_branch
          %575 = sbr.rel (%p573) target = $region32
        $region31: #{tcnse_mtl_forward.1} parent=11 // pred_region
          _
        $region32: #{tcnse_mtl_forward.1} parent=11 // pred_fallthru
          _
        // Predicated region
        $region33: #{tcnse_mtl_forward.1} parent=11 // pred_check
          %p576 = pneg %p184
        $region34: #{tcnse_mtl_forward.1} parent=11 // pred_check_branch
          %578 = sbr.rel (%p576) target = $region36
        $region35: #{tcnse_mtl_forward.1} parent=11 // pred_region
          _
        $region36: #{tcnse_mtl_forward.1} parent=11 // pred_fallthru
          _
        // Predicated region
        $region37: #{tcnse_mtl_forward.1} parent=11 // pred_check
          %p579 = pneg %p205
        $region38: #{tcnse_mtl_forward.1} parent=11 // pred_check_branch
          %581 = sbr.rel (%p579) target = $region40
        $region39: #{tcnse_mtl_forward.1} parent=11 // pred_region
          _
        $region40: #{tcnse_mtl_forward.1} parent=11 // pred_fallthru
          _
        // Predicated region
        $region41: #{tcnse_mtl_forward.1} parent=11 // pred_check
          %p582 = pneg %p226
        $region42: #{tcnse_mtl_forward.1} parent=11 // pred_check_branch
          %584 = sbr.rel (%p582) target = $region44
        $region43: #{tcnse_mtl_forward.1} parent=11 // pred_region
          _
        $region44: #{tcnse_mtl_forward.1} parent=11 // pred_fallthru
          _
        // Predicated region
        $region45: #{tcnse_mtl_forward.1} parent=11 // pred_check
          %p585 = pneg %p247
        $region46: #{tcnse_mtl_forward.1} parent=11 // pred_check_branch
          %587 = sbr.rel (%p585) target = $region48
        $region47: #{tcnse_mtl_forward.1} parent=11 // pred_region
          _
        $region48: #{tcnse_mtl_forward.1} parent=11 // pred_fallthru
          _
        // Predicated region
        $region49: #{tcnse_mtl_forward.1} parent=11 // pred_check
          %p588 = pneg %p268
        $region50: #{tcnse_mtl_forward.1} parent=11 // pred_check_branch
          %590 = sbr.rel (%p588) target = $region52
        $region51: #{tcnse_mtl_forward.1} parent=11 // pred_region
          _
        $region52: #{tcnse_mtl_forward.1} parent=11 // pred_fallthru
          _
        // Predicated region
        $region53: #{tcnse_mtl_forward.1} parent=11 // pred_check
          %p591 = pneg %p289
        $region54: #{tcnse_mtl_forward.1} parent=11 // pred_check_branch
          %593 = sbr.rel (%p591) target = $region56
        $region55: #{tcnse_mtl_forward.1} parent=11 // pred_region
          _
        $region56: #{tcnse_mtl_forward.1} parent=11 // pred_fallthru
          _
        // Predicated region
        $region57: #{tcnse_mtl_forward.1} parent=11 // pred_check
          %p594 = pneg %p310
        $region58: #{tcnse_mtl_forward.1} parent=11 // pred_check_branch
          %596 = sbr.rel (%p594) target = $region60
        $region59: #{tcnse_mtl_forward.1} parent=11 // pred_region
          _
        $region60: #{tcnse_mtl_forward.1} parent=11 // pred_fallthru
          _
        // Predicated region
        $region61: #{tcnse_mtl_forward.1} parent=11 // pred_check
          %p597 = pneg %p331
        $region62: #{tcnse_mtl_forward.1} parent=11 // pred_check_branch
          %599 = sbr.rel (%p597) target = $region64
        $region63: #{tcnse_mtl_forward.1} parent=11 // pred_region
          _
        $region64: #{tcnse_mtl_forward.1} parent=11 // pred_fallthru
          _
        // Predicated region
        $region65: #{tcnse_mtl_forward.1} parent=11 // pred_check
          %p600 = pneg %p352
        $region66: #{tcnse_mtl_forward.1} parent=11 // pred_check_branch
          %602 = sbr.rel (%p600) target = $region68
        $region67: #{tcnse_mtl_forward.1} parent=11 // pred_region
          _
        $region68: #{tcnse_mtl_forward.1} parent=11 // pred_fallthru
          _
        // Predicated region
        $region69: #{tcnse_mtl_forward.1} parent=11 // pred_check
          %p603 = pneg %p373
        $region70: #{tcnse_mtl_forward.1} parent=11 // pred_check_branch
          %605 = sbr.rel (%p603) target = $region72
        $region71: #{tcnse_mtl_forward.1} parent=11 // pred_region
          _
        $region72: #{tcnse_mtl_forward.1} parent=11 // pred_fallthru
          _
        // Predicated region
        $region73: #{tcnse_mtl_forward.1} parent=11 // pred_check
          %p606 = pneg %p394
        $region74: #{tcnse_mtl_forward.1} parent=11 // pred_check_branch
          %608 = sbr.rel (%p606) target = $region76
        $region75: #{tcnse_mtl_forward.1} parent=11 // pred_region
          _
        $region76: #{tcnse_mtl_forward.1} parent=11 // pred_fallthru
          _
        // Predicated region
        $region77: #{tcnse_mtl_forward.1} parent=11 // pred_check
          %p609 = pneg %p415
        $region78: #{tcnse_mtl_forward.1} parent=11 // pred_check_branch
          %611 = sbr.rel (%p609) target = $region80
        $region79: #{tcnse_mtl_forward.1} parent=11 // pred_region
          _
        $region80: #{tcnse_mtl_forward.1} parent=11 // pred_fallthru
          _
        // Predicated region
        $region81: #{tcnse_mtl_forward.1} parent=11 // pred_check
          %p612 = pneg %p436
        $region82: #{tcnse_mtl_forward.1} parent=11 // pred_check_branch
          %614 = sbr.rel (%p612) target = $region84
        $region83: #{tcnse_mtl_forward.1} parent=11 // pred_region
          _
        $region84: #{tcnse_mtl_forward.1} parent=11 // pred_fallthru
          _
        // Predicated region
        $region85: #{tcnse_mtl_forward.1} parent=11 // pred_check
          %p615 = pneg %p457
        $region86: #{tcnse_mtl_forward.1} parent=11 // pred_check_branch
          %617 = sbr.rel (%p615) target = $region88
        $region87: #{tcnse_mtl_forward.1} parent=11 // pred_region
          _
        $region88: #{tcnse_mtl_forward.1} parent=11 // pred_fallthru
          _
        // Predicated region
        $region89: #{tcnse_mtl_forward.1} parent=11 // pred_check
          %p618 = pneg %p478
        $region90: #{tcnse_mtl_forward.1} parent=11 // pred_check_branch
          %620 = sbr.rel (%p618) target = $region92
        $region91: #{tcnse_mtl_forward.1} parent=11 // pred_region
          _
        $region92: #{tcnse_mtl_forward.1} parent=11 // pred_fallthru
          _
        // Predicated region
        $region93: #{tcnse_mtl_forward.1} parent=11 // pred_check
          %p621 = pneg %p499
        $region94: #{tcnse_mtl_forward.1} parent=11 // pred_check_branch
          %623 = sbr.rel (%p621) target = $region96
        $region95: #{tcnse_mtl_forward.1} parent=11 // pred_region
          _
        $region96: #{tcnse_mtl_forward.1} parent=11 // pred_fallthru
          _
        // Predicated region
        $region97: #{tcnse_mtl_forward.1} parent=11 // pred_check
          %p624 = pneg %p520
        $region98: #{tcnse_mtl_forward.1} parent=11 // pred_check_branch
          %626 = sbr.rel (%p624) target = $region100
        $region99: #{tcnse_mtl_forward.1} parent=11 // pred_region
          _
        $region100: #{tcnse_mtl_forward.1} parent=11 // pred_fallthru
          _
      $region12: #{tcnse_mtl_forward.1} parent=5 // pred_fallthru
        _
      %p627 = scmp.lt.s32.totalorder %s32, 2
      // Predicated region
      $region101: #{tcnse_mtl_forward.1} parent=5 // pred_check
        %p628 = pneg %p627
      $region102: #{tcnse_mtl_forward.1} parent=5 // pred_check_branch
        %630 = sbr.rel (%p628) target = $region104
      $region103: #{tcnse_mtl_forward.1} parent=5 // pred_region
        // Predicated region
        $region105: #{tcnse_mtl_forward.1} parent=103 // pred_check
          %p631 = pneg %p52
        $region106: #{tcnse_mtl_forward.1} parent=103 // pred_check_branch
          %633 = sbr.rel (%p631) target = $region108
        $region107: #{tcnse_mtl_forward.1} parent=103 // pred_region
          %p634 = scmp.lt.s32.totalorder %s32, 1
          %s635 = scalar_select %p634, %s32, 1
          %s636 = smul.addr %s635, 2
          %s637 = smul.addr %s636, 8
          %s638 = scalar_lea.vmem %s0, %s637
        $region108: #{tcnse_mtl_forward.1} parent=103 // pred_fallthru
          _
      $region104: #{tcnse_mtl_forward.1} parent=5 // pred_fallthru
        _
      %p639 = scmp.le.s32.totalorder 1, %s32
      %p640 = scmp.lt.s32.totalorder %s32, 3
      %p641 = pnand %p639, %p640
      %p642 = pneg %p641
      // Predicated region
      $region109: #{tcnse_mtl_forward.1} parent=5 // pred_check
        _
      $region110: #{tcnse_mtl_forward.1} parent=5 // pred_check_branch
        %644 = sbr.rel (%p641) target = $region112
      $region111: #{tcnse_mtl_forward.1} parent=5 // pred_region
        %s645 = ssub.s32 %s32, 1
        %p646 = scmp.lt.s32.totalorder %s37, 1
        %s647 = scalar_select %p646, %s37, 1
        %s648 = smul.addr %s647, 2
        %s649 = smul.addr %s648, 8
        %s650 = scalar_lea.vmem %s0, %s649
        %p651 = pneg %p58
        %p652 = pneg %p55
        %p653 = pneg %p79
        %p654 = pneg %p76
        %p655 = pneg %p100
        %p656 = pneg %p97
        %p657 = pneg %p121
        %p658 = pneg %p118
        %p659 = pneg %p142
        %p660 = pneg %p139
        %p661 = pneg %p163
        %p662 = pneg %p160
        %p663 = pneg %p184
        %p664 = pneg %p181
        %p665 = pneg %p205
        %p666 = pneg %p202
        %p667 = pneg %p226
        %p668 = pneg %p223
        %p669 = pneg %p247
        %p670 = pneg %p244
        %p671 = pneg %p268
        %p672 = pneg %p265
        %p673 = pneg %p289
        %p674 = pneg %p286
        %p675 = pneg %p310
        %p676 = pneg %p307
        %p677 = pneg %p331
        %p678 = pneg %p328
        %p679 = pneg %p352
        %p680 = pneg %p349
        %p681 = pneg %p373
        %p682 = pneg %p370
        %p683 = pneg %p394
        %p684 = pneg %p391
        %p685 = pneg %p415
        %p686 = pneg %p412
        %p687 = pneg %p436
        %p688 = pneg %p433
        %p689 = pneg %p457
        %p690 = pneg %p454
        %p691 = pneg %p478
        %p692 = pneg %p475
        %p693 = pneg %p499
        %p694 = pneg %p496
        %p695 = pneg %p520
        %p696 = pneg %p517
        %p697 = pneg %p546
        %p698 = pneg %p543
        %s699 = sand.u32 %s533, 1
        %s700 = scalar_lea.sflag [#allocation4], %s699
        %s701 = sand.u32 %s533, 1
        %s702 = scalar_lea.vmem [#allocation3], %s701
        %p703 = scmp.lt.s32.totalorder %s37, 1
        %s704 = scalar_select %p703, %s37, 1
        %s705 = smul.addr %s704, 2
        %s706 = smul.addr %s705, 8
        %s707 = scalar_lea.vmem %s0, %s706
        %vm709 = vcmask 261120
        %710 = vst.msk [vmem:[#allocation2] sm:$0xff] %vm709, 0.0
        %v711 = vld [vmem:[%s707] sm:$0xff]
        %v712 = vld [vmem:[%s707 + $0x8] sm:$0xff]
        %vm713 = vcmask 31744
        %714 = vst.msk [vmem:[#allocation2 + $0x8] sm:$0xff] %vm713, %v711
        %715 = vst.msk [vmem:[#allocation2 + $0x10] sm:$0xff] %vm713, %v712
        %v716 = vld [vmem:[#allocation2 + $0x6] sm:$0xff]
        %v717 = vld [vmem:[#allocation2 + $0xe] sm:$0xff]
        %v718 = vld [vmem:[#allocation2 + $0x7] sm:$0xff]
        %v719 = vld [vmem:[#allocation2 + $0xf] sm:$0xff]
        %v720 = vld [vmem:[#allocation2 + $0x8] sm:$0xff]
        %v721 = vld [vmem:[#allocation2 + $0x10] sm:$0xff]
        %724 = vrot.lane.b32.xlu0 %v718, 4
        %v725 = vpop.permute.xlu0 %724
        %726 = vrot.lane.b32.xlu0 %v719, 4
        %v727 = vpop.permute.xlu0 %726
        %732 = vrot.lane.b32.xlu0 %v720, 8
        %v733 = vpop.permute.xlu0 %732
        %734 = vrot.lane.b32.xlu0 %v721, 8
        %v735 = vpop.permute.xlu0 %734
        %v738 = vsel %vm713, %v716, %v725
        %v739 = vsel %vm713, %v717, %v727
        %vm740 = vcmask 64512
        %v741 = vsel %vm740, %v738, %v733
        %v742 = vsel %vm740, %v739, %v735
        %v743 = vpack.c.bf16 %v742, %v741
        %v744 = vld [vmem:[%s1] sm:$0xf]
        %v745 = vld [vmem:[%s1 + $0x4] sm:$0x3]
        %v746 = vld [vmem:[%s2] sm:$0x1]
        %v748 = vperm.slane %v746, 0
        %v752 = vunpack.c.l.b16 %v744
        %v753 = vunpack.c.l.b16 %v745
        %v754 = vpack.c.b16 %v753, %v752
        %vm755 = vcmask 97280
        %v757 = vsel %vm755, %v743, 0
        %vm759 = vcmask 1045504
        %v761 = vsel %vm759, %v754, 0
        %763 = vmatpush.bf16.msra.mxu0 0
        %764 = vmatpush.bf16.msra.mxu0 0
        %765 = vmatpush.bf16.msra.mxu0 0
        %766 = vmatpush.bf16.msra.mxu0 0
        %767 = vmatpush.bf16.msra.mxu0 0
        %768 = vmatpush.bf16.msra.mxu0 0
        %769 = vmatpush.bf16.msra.mxu0 0
        %770 = vmatpush.bf16.msra.mxu0 %v761
        %771 = vmatmul.bf16.gmra.mxu0 %v757
        %v772 = vpop.f32.mrf.mxu0
        %v773 = vadd.f32 %v748, %v772
        %v774 = vpop.f32.mrf.mxu0
        %v775 = vadd.f32 %v748, %v774
        %776 = vdwg.mxu0
        %v777 = vmax.f32 %v773, 0.0
        %v778 = vmax.f32 %v775, 0.0
        %779 = vst.msk [vmem:[#allocation2 + $0x8] sm:$0xff] %vm709, %v777
        %780 = vst.msk [vmem:[#allocation2 + $0x10] sm:$0xff] %vm709, %v778
        %v781 = vld [vmem:[#allocation2 + $0x6] sm:$0xff]
        %v782 = vld [vmem:[#allocation2 + $0xe] sm:$0xff]
        %v783 = vld [vmem:[#allocation2 + $0x7] sm:$0xff]
        %v784 = vld [vmem:[#allocation2 + $0xf] sm:$0xff]
        %v785 = vld [vmem:[#allocation2 + $0x8] sm:$0xff]
        %v786 = vld [vmem:[#allocation2 + $0x10] sm:$0xff]
        %789 = vrot.lane.b32.xlu0 %v783, 32
        %v790 = vpop.permute.xlu0 %789
        %791 = vrot.lane.b32.xlu0 %v784, 32
        %v792 = vpop.permute.xlu0 %791
        %797 = vrot.lane.b32.xlu0 %v785, 64
        %v798 = vpop.permute.xlu0 %797
        %799 = vrot.lane.b32.xlu0 %v786, 64
        %v800 = vpop.permute.xlu0 %799
        %v803 = vsel %vm709, %v781, %v790
        %v804 = vsel %vm709, %v782, %v792
        %vm805 = vcmask 523264
        %v806 = vsel %vm805, %v803, %v798
        %v807 = vsel %vm805, %v804, %v800
        %v808 = vpack.c.bf16 %v807, %v806
        %v809 = vld [vmem:[%s3] sm:$0xf]
        %v810 = vld [vmem:[%s3 + $0x4] sm:$0xf]
        %v811 = vld [vmem:[%s3 + $0x8] sm:$0xf]
        %v812 = vld [vmem:[%s3 + $0xc] sm:$0xf]
        %v813 = vld [vmem:[%s3 + $0x10] sm:$0xf]
        %v814 = vld [vmem:[%s3 + $0x14] sm:$0xf]
        %v815 = vld [vmem:[%s3 + $0x18] sm:$0xf]
        %v816 = vld [vmem:[%s3 + $0x1c] sm:$0xf]
        %v817 = vld [vmem:[%s3 + $0x20] sm:$0xf]
        %v818 = vld [vmem:[%s3 + $0x24] sm:$0xf]
        %v819 = vld [vmem:[%s3 + $0x28] sm:$0xf]
        %v820 = vld [vmem:[%s3 + $0x2c] sm:$0xf]
        %v821 = vld [vmem:[%s4] sm:$0x1]
        %v823 = vperm.slane %v821, 0
        %v837 = vunpack.c.l.b16 %v809
        %v838 = vunpack.c.l.b16 %v810
        %v839 = vunpack.c.l.b16 %v811
        %v840 = vunpack.c.l.b16 %v812
        %v841 = vunpack.c.l.b16 %v813
        %v842 = vunpack.c.l.b16 %v814
        %v843 = vunpack.c.l.b16 %v815
        %v844 = vunpack.c.l.b16 %v816
        %v845 = vunpack.c.l.b16 %v817
        %v846 = vunpack.c.l.b16 %v818
        %v847 = vunpack.c.l.b16 %v819
        %v848 = vunpack.c.l.b16 %v820
        %v849 = vpack.c.b16 %v838, %v837
        %v850 = vpack.c.b16 %v840, %v839
        %v851 = vpack.c.b16 %v842, %v841
        %v852 = vpack.c.b16 %v844, %v843
        %v853 = vpack.c.b16 %v846, %v845
        %v854 = vpack.c.b16 %v848, %v847
        %vm861 = vcmask 785408
        %v863 = vsel %vm861, %v808, 0
        %865 = vmatpush.bf16.msra.mxu0 0
        %866 = vmatpush.bf16.msra.mxu0 0
        %867 = vmatpush.bf16.msra.mxu0 %v854
        %868 = vmatpush.bf16.msra.mxu0 %v853
        %869 = vmatpush.bf16.msra.mxu0 %v852
        %870 = vmatpush.bf16.msra.mxu0 %v851
        %871 = vmatpush.bf16.msra.mxu0 %v850
        %872 = vmatpush.bf16.msra.mxu0 %v849
        %873 = vmatmul.bf16.gmra.mxu0 %v863
        %v874 = vpop.f32.mrf.mxu0
        %v875 = vadd.f32 %v823, %v874
        %v876 = vpop.f32.mrf.mxu0
        %v877 = vadd.f32 %v823, %v876
        %878 = vdwg.mxu0
        %v879 = vmax.f32 %v875, 0.0
        %v880 = vmax.f32 %v877, 0.0
        %v881 = vpack.c.bf16 %v712, %v711
        %v882 = vld [vmem:[%s5] sm:$0x3]
        %v883 = vld [vmem:[%s6] sm:$0x1]
        %v885 = vperm.slane %v883, 0
        %v888 = vsel %vm713, %v881, 0
        %vm890 = vcmask 1041408
        %v892 = vsel %vm890, %v882, 0
        %894 = vmatpush.bf16.msra.mxu0 0
        %895 = vmatpush.bf16.msra.mxu0 0
        %896 = vmatpush.bf16.msra.mxu0 0
        %897 = vmatpush.bf16.msra.mxu0 0
        %898 = vmatpush.bf16.msra.mxu0 0
        %899 = vmatpush.bf16.msra.mxu0 0
        %900 = vmatpush.bf16.msra.mxu0 0
        %901 = vmatpush.bf16.msra.mxu0 %v892
        %902 = vmatmul.bf16.gmra.mxu0 %v888
        %v903 = vpop.f32.mrf.mxu0
        %v904 = vadd.f32 %v885, %v903
        %v905 = vpop.f32.mrf.mxu0
        %v906 = vadd.f32 %v885, %v905
        %907 = vdwg.mxu0
        %v908 = vsel %vm709, %v879, 0.0
        %v909 = vsel %vm709, %v880, 0.0
        %v910 = vadd.f32 %v908, %v909
        %v911 = vrot.slane %v910, 4
        %v912 = vadd.f32 %v910, %v911
        %v913 = vrot.slane %v912, 2
        %v914 = vadd.f32 %v912, %v913
        %v915 = vrot.slane %v914, 1
        %v916 = vadd.f32 %v914, %v915
        %v917 = vrcp.pop 16.0
        %v918 = vmul.f32 16.0, %v917
        %v919 = vsub.f32 1.0, %v918
        %v920 = vmul.f32 %v917, %v919
        %v921 = vadd.f32 %v917, %v920
        %vm922 = vweird.f32 %v917
        %v923 = vsel %vm922, %v917, %v921
        %v924 = vmul.f32 %v916, %v923
        %v925 = vld [vmem:[%s7] sm:$0xff]
        %v926 = vld [vmem:[%s7 + $0x8] sm:$0xff]
        %v927 = vld [vmem:[%s7 + $0x10] sm:$0xff]
        %v928 = vld [vmem:[%s7 + $0x18] sm:$0xff]
        %v930 = vsel %vm709, %v924, 0
        %932 = vmatpush.msra.mxu0 0.0
        %933 = vmatpush.msra.mxu0 0.0
        %934 = vmatpush.msra.mxu0 0.0
        %935 = vmatpush.msra.mxu0 0.0
        %936 = vmatpush.msra.mxu0 0.0
        %937 = vmatpush.msra.mxu0 0.0
        %938 = vmatpush.msra.mxu0 0.0
        %939 = vmatpush.msra.mxu0 0.0
        %940 = vmatpush.msra.mxu0 0.0
        %941 = vmatpush.msra.mxu0 0.0
        %942 = vmatpush.msra.mxu0 0.0
        %943 = vmatpush.msra.mxu0 0.0
        %v944 = vand.u32 %v928, 4294901760
        %945 = vmatpush.msra.mxu0 %v944
        %v946 = vand.u32 %v927, 4294901760
        %947 = vmatpush.msra.mxu0 %v946
        %v948 = vand.u32 %v926, 4294901760
        %949 = vmatpush.msra.mxu0 %v948
        %v950 = vand.u32 %v925, 4294901760
        %951 = vmatpush.msra.mxu0 %v950
        %v952 = vand.u32 %v930, 4294901760
        %v953 = vsub.f32 %v930, %v952
        %v954 = vand.u32 %v953, 4294901760
        %v955 = vsub.f32 %v953, %v954
        %v956 = vand.u32 %v955, 4294901760
        %957 = vmatmul.f32.gmra.mxu0 %v956
        %v958 = vpop.f32.mrf.mxu0
        %v959 = vadd.f32 0.0, %v958
        %960 = vdwg.mxu0
        %961 = vmatpush.msra.mxu0 0.0
        %962 = vmatpush.msra.mxu0 0.0
        %963 = vmatpush.msra.mxu0 0.0
        %964 = vmatpush.msra.mxu0 0.0
        %965 = vmatpush.msra.mxu0 0.0
        %966 = vmatpush.msra.mxu0 0.0
        %967 = vmatpush.msra.mxu0 0.0
        %968 = vmatpush.msra.mxu0 0.0
        %969 = vmatpush.msra.mxu0 0.0
        %970 = vmatpush.msra.mxu0 0.0
        %971 = vmatpush.msra.mxu0 0.0
        %972 = vmatpush.msra.mxu0 0.0
        %v973 = vand.u32 %v928, 4294901760
        %v974 = vsub.f32 %v928, %v973
        %v975 = vand.u32 %v974, 4294901760
        %v976 = vsub.f32 %v974, %v975
        %v977 = vand.u32 %v976, 4294901760
        %978 = vmatpush.msra.mxu0 %v977
        %v979 = vand.u32 %v927, 4294901760
        %v980 = vsub.f32 %v927, %v979
        %v981 = vand.u32 %v980, 4294901760
        %v982 = vsub.f32 %v980, %v981
        %v983 = vand.u32 %v982, 4294901760
        %984 = vmatpush.msra.mxu0 %v983
        %v985 = vand.u32 %v926, 4294901760
        %v986 = vsub.f32 %v926, %v985
        %v987 = vand.u32 %v986, 4294901760
        %v988 = vsub.f32 %v986, %v987
        %v989 = vand.u32 %v988, 4294901760
        %990 = vmatpush.msra.mxu0 %v989
        %v991 = vand.u32 %v925, 4294901760
        %v992 = vsub.f32 %v925, %v991
        %v993 = vand.u32 %v992, 4294901760
        %v994 = vsub.f32 %v992, %v993
        %v995 = vand.u32 %v994, 4294901760
        %996 = vmatpush.msra.mxu0 %v995
        %v997 = vand.u32 %v930, 4294901760
        %998 = vmatmul.f32.gmra.mxu0 %v997
        %v999 = vpop.f32.mrf.mxu0
        %v1000 = vadd.f32 %v959, %v999
        %1001 = vdwg.mxu0
        %1002 = vmatpush.msra.mxu0 0.0
        %1003 = vmatpush.msra.mxu0 0.0
        %1004 = vmatpush.msra.mxu0 0.0
        %1005 = vmatpush.msra.mxu0 0.0
        %1006 = vmatpush.msra.mxu0 0.0
        %1007 = vmatpush.msra.mxu0 0.0
        %1008 = vmatpush.msra.mxu0 0.0
        %1009 = vmatpush.msra.mxu0 0.0
        %1010 = vmatpush.msra.mxu0 0.0
        %1011 = vmatpush.msra.mxu0 0.0
        %1012 = vmatpush.msra.mxu0 0.0
        %1013 = vmatpush.msra.mxu0 0.0
        %v1014 = vand.u32 %v928, 4294901760
        %v1015 = vsub.f32 %v928, %v1014
        %1016 = vmatpush.msra.mxu0 %v1015
        %v1017 = vand.u32 %v927, 4294901760
        %v1018 = vsub.f32 %v927, %v1017
        %1019 = vmatpush.msra.mxu0 %v1018
        %v1020 = vand.u32 %v926, 4294901760
        %v1021 = vsub.f32 %v926, %v1020
        %1022 = vmatpush.msra.mxu0 %v1021
        %v1023 = vand.u32 %v925, 4294901760
        %v1024 = vsub.f32 %v925, %v1023
        %1025 = vmatpush.msra.mxu0 %v1024
        %v1026 = vand.u32 %v930, 4294901760
        %v1027 = vsub.f32 %v930, %v1026
        %1028 = vmatmul.f32.gmra.mxu0 %v1027
        %v1029 = vpop.f32.mrf.mxu0
        %v1030 = vadd.f32 %v1000, %v1029
        %1031 = vdwg.mxu0
        %1032 = vmatpush.msra.mxu0 0.0
        %1033 = vmatpush.msra.mxu0 0.0
        %1034 = vmatpush.msra.mxu0 0.0
        %1035 = vmatpush.msra.mxu0 0.0
        %1036 = vmatpush.msra.mxu0 0.0
        %1037 = vmatpush.msra.mxu0 0.0
        %1038 = vmatpush.msra.mxu0 0.0
        %1039 = vmatpush.msra.mxu0 0.0
        %1040 = vmatpush.msra.mxu0 0.0
        %1041 = vmatpush.msra.mxu0 0.0
        %1042 = vmatpush.msra.mxu0 0.0
        %1043 = vmatpush.msra.mxu0 0.0
        %v1044 = vand.u32 %v928, 4294901760
        %1045 = vmatpush.msra.mxu0 %v1044
        %v1046 = vand.u32 %v927, 4294901760
        %1047 = vmatpush.msra.mxu0 %v1046
        %v1048 = vand.u32 %v926, 4294901760
        %1049 = vmatpush.msra.mxu0 %v1048
        %v1050 = vand.u32 %v925, 4294901760
        %1051 = vmatpush.msra.mxu0 %v1050
        %v1052 = vand.u32 %v930, 4294901760
        %v1053 = vsub.f32 %v930, %v1052
        %v1054 = vand.u32 %v1053, 4294901760
        %1055 = vmatmul.f32.gmra.mxu0 %v1054
        %v1056 = vpop.f32.mrf.mxu0
        %v1057 = vadd.f32 %v1030, %v1056
        %1058 = vdwg.mxu0
        %1059 = vmatpush.msra.mxu0 0.0
        %1060 = vmatpush.msra.mxu0 0.0
        %1061 = vmatpush.msra.mxu0 0.0
        %1062 = vmatpush.msra.mxu0 0.0
        %1063 = vmatpush.msra.mxu0 0.0
        %1064 = vmatpush.msra.mxu0 0.0
        %1065 = vmatpush.msra.mxu0 0.0
        %1066 = vmatpush.msra.mxu0 0.0
        %1067 = vmatpush.msra.mxu0 0.0
        %1068 = vmatpush.msra.mxu0 0.0
        %1069 = vmatpush.msra.mxu0 0.0
        %1070 = vmatpush.msra.mxu0 0.0
        %v1071 = vand.u32 %v928, 4294901760
        %v1072 = vsub.f32 %v928, %v1071
        %v1073 = vand.u32 %v1072, 4294901760
        %1074 = vmatpush.msra.mxu0 %v1073
        %v1075 = vand.u32 %v927, 4294901760
        %v1076 = vsub.f32 %v927, %v1075
        %v1077 = vand.u32 %v1076, 4294901760
        %1078 = vmatpush.msra.mxu0 %v1077
        %v1079 = vand.u32 %v926, 4294901760
        %v1080 = vsub.f32 %v926, %v1079
        %v1081 = vand.u32 %v1080, 4294901760
        %1082 = vmatpush.msra.mxu0 %v1081
        %v1083 = vand.u32 %v925, 4294901760
        %v1084 = vsub.f32 %v925, %v1083
        %v1085 = vand.u32 %v1084, 4294901760
        %1086 = vmatpush.msra.mxu0 %v1085
        %v1087 = vand.u32 %v930, 4294901760
        %1088 = vmatmul.f32.gmra.mxu0 %v1087
        %v1089 = vpop.f32.mrf.mxu0
        %v1090 = vadd.f32 %v1057, %v1089
        %1091 = vdwg.mxu0
        %1092 = vmatpush.msra.mxu0 0.0
        %1093 = vmatpush.msra.mxu0 0.0
        %1094 = vmatpush.msra.mxu0 0.0
        %1095 = vmatpush.msra.mxu0 0.0
        %1096 = vmatpush.msra.mxu0 0.0
        %1097 = vmatpush.msra.mxu0 0.0
        %1098 = vmatpush.msra.mxu0 0.0
        %1099 = vmatpush.msra.mxu0 0.0
        %1100 = vmatpush.msra.mxu0 0.0
        %1101 = vmatpush.msra.mxu0 0.0
        %1102 = vmatpush.msra.mxu0 0.0
        %1103 = vmatpush.msra.mxu0 0.0
        %v1104 = vand.u32 %v928, 4294901760
        %1105 = vmatpush.msra.mxu0 %v1104
        %v1106 = vand.u32 %v927, 4294901760
        %1107 = vmatpush.msra.mxu0 %v1106
        %v1108 = vand.u32 %v926, 4294901760
        %1109 = vmatpush.msra.mxu0 %v1108
        %v1110 = vand.u32 %v925, 4294901760
        %1111 = vmatpush.msra.mxu0 %v1110
        %v1112 = vand.u32 %v930, 4294901760
        %1113 = vmatmul.f32.gmra.mxu0 %v1112
        %v1114 = vpop.f32.mrf.mxu0
        %v1115 = vadd.f32 %v1090, %v1114
        %1116 = vdwg.mxu0
        %v1117 = vmax.f32 %v1115, 0.0
        %v1118 = vld [vmem:[%s8] sm:$0x3]
        %vm1119 = vcmask 15360
        %v1121 = vsel %vm1119, %v1117, 0
        %v1124 = vsel %vm890, %v1118, 0
        %1126 = vmatpush.msra.mxu0 0.0
        %1127 = vmatpush.msra.mxu0 0.0
        %1128 = vmatpush.msra.mxu0 0.0
        %1129 = vmatpush.msra.mxu0 0.0
        %1130 = vmatpush.msra.mxu0 0.0
        %1131 = vmatpush.msra.mxu0 0.0
        %1132 = vmatpush.msra.mxu0 0.0
        %1133 = vmatpush.msra.mxu0 0.0
        %1134 = vmatpush.msra.mxu0 0.0
        %1135 = vmatpush.msra.mxu0 0.0
        %1136 = vmatpush.msra.mxu0 0.0
        %1137 = vmatpush.msra.mxu0 0.0
        %1138 = vmatpush.msra.mxu0 0.0
        %1139 = vmatpush.msra.mxu0 0.0
        %1140 = vmatpush.msra.mxu0 0.0
        %v1141 = vand.u32 %v1124, 4294901760
        %1142 = vmatpush.msra.mxu0 %v1141
        %v1143 = vand.u32 %v1121, 4294901760
        %v1144 = vsub.f32 %v1121, %v1143
        %v1145 = vand.u32 %v1144, 4294901760
        %v1146 = vsub.f32 %v1144, %v1145
        %v1147 = vand.u32 %v1146, 4294901760
        %1148 = vmatmul.f32.gmra.mxu0 %v1147
        %v1149 = vpop.f32.mrf.mxu0
        %v1150 = vadd.f32 0.0, %v1149
        %1151 = vdwg.mxu0
        %1152 = vmatpush.msra.mxu0 0.0
        %1153 = vmatpush.msra.mxu0 0.0
        %1154 = vmatpush.msra.mxu0 0.0
        %1155 = vmatpush.msra.mxu0 0.0
        %1156 = vmatpush.msra.mxu0 0.0
        %1157 = vmatpush.msra.mxu0 0.0
        %1158 = vmatpush.msra.mxu0 0.0
        %1159 = vmatpush.msra.mxu0 0.0
        %1160 = vmatpush.msra.mxu0 0.0
        %1161 = vmatpush.msra.mxu0 0.0
        %1162 = vmatpush.msra.mxu0 0.0
        %1163 = vmatpush.msra.mxu0 0.0
        %1164 = vmatpush.msra.mxu0 0.0
        %1165 = vmatpush.msra.mxu0 0.0
        %1166 = vmatpush.msra.mxu0 0.0
        %v1167 = vand.u32 %v1124, 4294901760
        %v1168 = vsub.f32 %v1124, %v1167
        %v1169 = vand.u32 %v1168, 4294901760
        %v1170 = vsub.f32 %v1168, %v1169
        %v1171 = vand.u32 %v1170, 4294901760
        %1172 = vmatpush.msra.mxu0 %v1171
        %v1173 = vand.u32 %v1121, 4294901760
        %1174 = vmatmul.f32.gmra.mxu0 %v1173
        %v1175 = vpop.f32.mrf.mxu0
        %v1176 = vadd.f32 %v1150, %v1175
        %1177 = vdwg.mxu0
        %1178 = vmatpush.msra.mxu0 0.0
        %1179 = vmatpush.msra.mxu0 0.0
        %1180 = vmatpush.msra.mxu0 0.0
        %1181 = vmatpush.msra.mxu0 0.0
        %1182 = vmatpush.msra.mxu0 0.0
        %1183 = vmatpush.msra.mxu0 0.0
        %1184 = vmatpush.msra.mxu0 0.0
        %1185 = vmatpush.msra.mxu0 0.0
        %1186 = vmatpush.msra.mxu0 0.0
        %1187 = vmatpush.msra.mxu0 0.0
        %1188 = vmatpush.msra.mxu0 0.0
        %1189 = vmatpush.msra.mxu0 0.0
        %1190 = vmatpush.msra.mxu0 0.0
        %1191 = vmatpush.msra.mxu0 0.0
        %1192 = vmatpush.msra.mxu0 0.0
        %v1193 = vand.u32 %v1124, 4294901760
        %v1194 = vsub.f32 %v1124, %v1193
        %1195 = vmatpush.msra.mxu0 %v1194
        %v1196 = vand.u32 %v1121, 4294901760
        %v1197 = vsub.f32 %v1121, %v1196
        %1198 = vmatmul.f32.gmra.mxu0 %v1197
        %v1199 = vpop.f32.mrf.mxu0
        %v1200 = vadd.f32 %v1176, %v1199
        %1201 = vdwg.mxu0
        %1202 = vmatpush.msra.mxu0 0.0
        %1203 = vmatpush.msra.mxu0 0.0
        %1204 = vmatpush.msra.mxu0 0.0
        %1205 = vmatpush.msra.mxu0 0.0
        %1206 = vmatpush.msra.mxu0 0.0
        %1207 = vmatpush.msra.mxu0 0.0
        %1208 = vmatpush.msra.mxu0 0.0
        %1209 = vmatpush.msra.mxu0 0.0
        %1210 = vmatpush.msra.mxu0 0.0
        %1211 = vmatpush.msra.mxu0 0.0
        %1212 = vmatpush.msra.mxu0 0.0
        %1213 = vmatpush.msra.mxu0 0.0
        %1214 = vmatpush.msra.mxu0 0.0
        %1215 = vmatpush.msra.mxu0 0.0
        %1216 = vmatpush.msra.mxu0 0.0
        %v1217 = vand.u32 %v1124, 4294901760
        %1218 = vmatpush.msra.mxu0 %v1217
        %v1219 = vand.u32 %v1121, 4294901760
        %v1220 = vsub.f32 %v1121, %v1219
        %v1221 = vand.u32 %v1220, 4294901760
        %1222 = vmatmul.f32.gmra.mxu0 %v1221
        %v1223 = vpop.f32.mrf.mxu0
        %v1224 = vadd.f32 %v1200, %v1223
        %1225 = vdwg.mxu0
        %1226 = vmatpush.msra.mxu0 0.0
        %1227 = vmatpush.msra.mxu0 0.0
        %1228 = vmatpush.msra.mxu0 0.0
        %1229 = vmatpush.msra.mxu0 0.0
        %1230 = vmatpush.msra.mxu0 0.0
        %1231 = vmatpush.msra.mxu0 0.0
        %1232 = vmatpush.msra.mxu0 0.0
        %1233 = vmatpush.msra.mxu0 0.0
        %1234 = vmatpush.msra.mxu0 0.0
        %1235 = vmatpush.msra.mxu0 0.0
        %1236 = vmatpush.msra.mxu0 0.0
        %1237 = vmatpush.msra.mxu0 0.0
        %1238 = vmatpush.msra.mxu0 0.0
        %1239 = vmatpush.msra.mxu0 0.0
        %1240 = vmatpush.msra.mxu0 0.0
        %v1241 = vand.u32 %v1124, 4294901760
        %v1242 = vsub.f32 %v1124, %v1241
        %v1243 = vand.u32 %v1242, 4294901760
        %1244 = vmatpush.msra.mxu0 %v1243
        %v1245 = vand.u32 %v1121, 4294901760
        %1246 = vmatmul.f32.gmra.mxu0 %v1245
        %v1247 = vpop.f32.mrf.mxu0
        %v1248 = vadd.f32 %v1224, %v1247
        %1249 = vdwg.mxu0
        %1250 = vmatpush.msra.mxu0 0.0
        %1251 = vmatpush.msra.mxu0 0.0
        %1252 = vmatpush.msra.mxu0 0.0
        %1253 = vmatpush.msra.mxu0 0.0
        %1254 = vmatpush.msra.mxu0 0.0
        %1255 = vmatpush.msra.mxu0 0.0
        %1256 = vmatpush.msra.mxu0 0.0
        %1257 = vmatpush.msra.mxu0 0.0
        %1258 = vmatpush.msra.mxu0 0.0
        %1259 = vmatpush.msra.mxu0 0.0
        %1260 = vmatpush.msra.mxu0 0.0
        %1261 = vmatpush.msra.mxu0 0.0
        %1262 = vmatpush.msra.mxu0 0.0
        %1263 = vmatpush.msra.mxu0 0.0
        %1264 = vmatpush.msra.mxu0 0.0
        %v1265 = vand.u32 %v1124, 4294901760
        %1266 = vmatpush.msra.mxu0 %v1265
        %v1267 = vand.u32 %v1121, 4294901760
        %1268 = vmatmul.f32.gmra.mxu0 %v1267
        %v1269 = vpop.f32.mrf.mxu0
        %v1270 = vadd.f32 %v1248, %v1269
        %1271 = vdwg.mxu0
        %v1272 = vsub.f32 0.0, %v1270
        %v1273 = vmul.f32 %v1272, 1.442695
        %v1274 = vpow.pop %v1273
        %v1275 = vadd.f32 %v1274, 1.0
        %v1276 = vrcp.pop %v1275
        %v1277 = vmul.f32 %v1275, %v1276
        %v1278 = vsub.f32 1.0, %v1277
        %v1279 = vmul.f32 %v1276, %v1278
        %v1280 = vadd.f32 %v1276, %v1279
        %vm1281 = vweird.f32 %v1275
        %vm1282 = vweird.f32 %v1276
        %vm1283 = vmor %vm1281, %vm1282
        %v1284 = vsel %vm1283, %v1276, %v1280
        %v1285 = vand.u32 2147483647, %v1275
        %vm1286 = vcmp.eq.f32.partialorder %v1285, 8.507059e+37
        %v1287 = vand.u32 %v1275, 2147483648
        %v1288 = vor.u32 1.1754944e-38, %v1287
        %v1289 = vsel %vm1286, %v1288, %v1284
        %v1290 = vmul.f32 1.0, %v1289
        %v1291 = vperm.slane %v1290, 0
        %v1292 = vmul.f32 %v879, %v1291
        %v1293 = vmul.f32 %v880, %v1291
        %v1294 = vadd.f32 %v1292, %v904
        %v1295 = vadd.f32 %v1293, %v906
        %v1296 = vmax.f32 %v1294, 0.0
        %v1297 = vmax.f32 %v1295, 0.0
        %1298 = vst.msk [vmem:[#allocation2 + $0x8] sm:$0xff] %vm709, %v1296
        %1299 = vst.msk [vmem:[#allocation2 + $0x10] sm:$0xff] %vm709, %v1297
        %v1300 = vld [vmem:[#allocation2 + $0x4] sm:$0xff]
        %v1301 = vld [vmem:[#allocation2 + $0xc] sm:$0xff]
        %v1302 = vld [vmem:[#allocation2 + $0x6] sm:$0xff]
        %v1303 = vld [vmem:[#allocation2 + $0xe] sm:$0xff]
        %v1304 = vld [vmem:[#allocation2 + $0x8] sm:$0xff]
        %v1305 = vld [vmem:[#allocation2 + $0x10] sm:$0xff]
        %1308 = vrot.lane.b32.xlu0 %v1302, 32
        %v1309 = vpop.permute.xlu0 %1308
        %1310 = vrot.lane.b32.xlu0 %v1303, 32
        %v1311 = vpop.permute.xlu0 %1310
        %1316 = vrot.lane.b32.xlu0 %v1304, 64
        %v1317 = vpop.permute.xlu0 %1316
        %1318 = vrot.lane.b32.xlu0 %v1305, 64
        %v1319 = vpop.permute.xlu0 %1318
        %v1322 = vsel %vm709, %v1300, %v1309
        %v1323 = vsel %vm709, %v1301, %v1311
        %v1324 = vsel %vm805, %v1322, %v1317
        %v1325 = vsel %vm805, %v1323, %v1319
        %v1326 = vpack.c.bf16 %v1325, %v1324
        %v1327 = vld [vmem:[%s9] sm:$0xf]
        %v1328 = vld [vmem:[%s9 + $0x4] sm:$0xf]
        %v1329 = vld [vmem:[%s9 + $0x8] sm:$0xf]
        %v1330 = vld [vmem:[%s9 + $0xc] sm:$0xf]
        %v1331 = vld [vmem:[%s9 + $0x10] sm:$0xf]
        %v1332 = vld [vmem:[%s9 + $0x14] sm:$0xf]
        %v1333 = vld [vmem:[%s9 + $0x18] sm:$0xf]
        %v1334 = vld [vmem:[%s9 + $0x1c] sm:$0xf]
        %v1335 = vld [vmem:[%s9 + $0x20] sm:$0xf]
        %v1336 = vld [vmem:[%s9 + $0x24] sm:$0xf]
        %v1337 = vld [vmem:[%s9 + $0x28] sm:$0xf]
        %v1338 = vld [vmem:[%s9 + $0x2c] sm:$0xf]
        %v1339 = vld [vmem:[%s10] sm:$0x1]
        %v1341 = vperm.slane %v1339, 0
        %v1355 = vunpack.c.l.b16 %v1327
        %v1356 = vunpack.c.l.b16 %v1328
        %v1357 = vunpack.c.l.b16 %v1329
        %v1358 = vunpack.c.l.b16 %v1330
        %v1359 = vunpack.c.l.b16 %v1331
        %v1360 = vunpack.c.l.b16 %v1332
        %v1361 = vunpack.c.l.b16 %v1333
        %v1362 = vunpack.c.l.b16 %v1334
        %v1363 = vunpack.c.l.b16 %v1335
        %v1364 = vunpack.c.l.b16 %v1336
        %v1365 = vunpack.c.l.b16 %v1337
        %v1366 = vunpack.c.l.b16 %v1338
        %v1367 = vpack.c.b16 %v1356, %v1355
        %v1368 = vpack.c.b16 %v1358, %v1357
        %v1369 = vpack.c.b16 %v1360, %v1359
        %v1370 = vpack.c.b16 %v1362, %v1361
        %v1371 = vpack.c.b16 %v1364, %v1363
        %v1372 = vpack.c.b16 %v1366, %v1365
        %v1380 = vsel %vm861, %v1326, 0
        %1382 = vmatpush.bf16.msra.mxu0 0
        %1383 = vmatpush.bf16.msra.mxu0 0
        %1384 = vmatpush.bf16.msra.mxu0 %v1372
        %1385 = vmatpush.bf16.msra.mxu0 %v1371
        %1386 = vmatpush.bf16.msra.mxu0 %v1370
        %1387 = vmatpush.bf16.msra.mxu0 %v1369
        %1388 = vmatpush.bf16.msra.mxu0 %v1368
        %1389 = vmatpush.bf16.msra.mxu0 %v1367
        %1390 = vmatmul.bf16.gmra.mxu0 %v1380
        %v1391 = vpop.f32.mrf.mxu0
        %v1392 = vadd.f32 %v1341, %v1391
        %v1393 = vpop.f32.mrf.mxu0
        %v1394 = vadd.f32 %v1341, %v1393
        %1395 = vdwg.mxu0
        %v1396 = vmax.f32 %v1392, 0.0
        %v1397 = vmax.f32 %v1394, 0.0
        %1398 = vst.msk [vmem:[#allocation2 + $0x8] sm:$0xff] %vm709, %v1396
        %1399 = vst.msk [vmem:[#allocation2 + $0x10] sm:$0xff] %vm709, %v1397
        %v1400 = vld [vmem:[#allocation2 + $0x4] sm:$0xff]
        %v1401 = vld [vmem:[#allocation2 + $0xc] sm:$0xff]
        %v1402 = vld [vmem:[#allocation2 + $0x6] sm:$0xff]
        %v1403 = vld [vmem:[#allocation2 + $0xe] sm:$0xff]
        %v1404 = vld [vmem:[#allocation2 + $0x8] sm:$0xff]
        %v1405 = vld [vmem:[#allocation2 + $0x10] sm:$0xff]
        %1408 = vrot.lane.b32.xlu0 %v1402, 32
        %v1409 = vpop.permute.xlu0 %1408
        %1410 = vrot.lane.b32.xlu0 %v1403, 32
        %v1411 = vpop.permute.xlu0 %1410
        %1416 = vrot.lane.b32.xlu0 %v1404, 64
        %v1417 = vpop.permute.xlu0 %1416
        %1418 = vrot.lane.b32.xlu0 %v1405, 64
        %v1419 = vpop.permute.xlu0 %1418
        %v1422 = vsel %vm709, %v1400, %v1409
        %v1423 = vsel %vm709, %v1401, %v1411
        %v1424 = vsel %vm805, %v1422, %v1417
        %v1425 = vsel %vm805, %v1423, %v1419
        %v1426 = vpack.c.bf16 %v1425, %v1424
        %v1427 = vld [vmem:[%s11] sm:$0xf]
        %v1428 = vld [vmem:[%s11 + $0x4] sm:$0xf]
        %v1429 = vld [vmem:[%s11 + $0x8] sm:$0xf]
        %v1430 = vld [vmem:[%s11 + $0xc] sm:$0xf]
        %v1431 = vld [vmem:[%s11 + $0x10] sm:$0xf]
        %v1432 = vld [vmem:[%s11 + $0x14] sm:$0xf]
        %v1433 = vld [vmem:[%s11 + $0x18] sm:$0xf]
        %v1434 = vld [vmem:[%s11 + $0x1c] sm:$0xf]
        %v1435 = vld [vmem:[%s11 + $0x20] sm:$0xf]
        %v1436 = vld [vmem:[%s11 + $0x24] sm:$0xf]
        %v1437 = vld [vmem:[%s11 + $0x28] sm:$0xf]
        %v1438 = vld [vmem:[%s11 + $0x2c] sm:$0xf]
        %v1439 = vld [vmem:[%s12] sm:$0x1]
        %v1441 = vperm.slane %v1439, 0
        %v1455 = vunpack.c.l.b16 %v1427
        %v1456 = vunpack.c.l.b16 %v1428
        %v1457 = vunpack.c.l.b16 %v1429
        %v1458 = vunpack.c.l.b16 %v1430
        %v1459 = vunpack.c.l.b16 %v1431
        %v1460 = vunpack.c.l.b16 %v1432
        %v1461 = vunpack.c.l.b16 %v1433
        %v1462 = vunpack.c.l.b16 %v1434
        %v1463 = vunpack.c.l.b16 %v1435
        %v1464 = vunpack.c.l.b16 %v1436
        %v1465 = vunpack.c.l.b16 %v1437
        %v1466 = vunpack.c.l.b16 %v1438
        %v1467 = vpack.c.b16 %v1456, %v1455
        %v1468 = vpack.c.b16 %v1458, %v1457
        %v1469 = vpack.c.b16 %v1460, %v1459
        %v1470 = vpack.c.b16 %v1462, %v1461
        %v1471 = vpack.c.b16 %v1464, %v1463
        %v1472 = vpack.c.b16 %v1466, %v1465
        %v1480 = vsel %vm861, %v1426, 0
        %1482 = vmatpush.bf16.msra.mxu0 0
        %1483 = vmatpush.bf16.msra.mxu0 0
        %1484 = vmatpush.bf16.msra.mxu0 %v1472
        %1485 = vmatpush.bf16.msra.mxu0 %v1471
        %1486 = vmatpush.bf16.msra.mxu0 %v1470
        %1487 = vmatpush.bf16.msra.mxu0 %v1469
        %1488 = vmatpush.bf16.msra.mxu0 %v1468
        %1489 = vmatpush.bf16.msra.mxu0 %v1467
        %1490 = vmatmul.bf16.gmra.mxu0 %v1480
        %v1491 = vpop.f32.mrf.mxu0
        %v1492 = vadd.f32 %v1441, %v1491
        %v1493 = vpop.f32.mrf.mxu0
        %v1494 = vadd.f32 %v1441, %v1493
        %1495 = vdwg.mxu0
        %v1496 = vmax.f32 %v1492, 0.0
        %v1497 = vmax.f32 %v1494, 0.0
        %v1498 = vsel %vm709, %v1496, 0.0
        %v1499 = vsel %vm709, %v1497, 0.0
        %v1500 = vadd.f32 %v1498, %v1499
        %v1501 = vrot.slane %v1500, 4
        %v1502 = vadd.f32 %v1500, %v1501
        %v1503 = vrot.slane %v1502, 2
        %v1504 = vadd.f32 %v1502, %v1503
        %v1505 = vrot.slane %v1504, 1
        %v1506 = vadd.f32 %v1504, %v1505
        %v1507 = vmul.f32 %v1506, %v923
        %v1508 = vld [vmem:[%s13] sm:$0xff]
        %v1509 = vld [vmem:[%s13 + $0x8] sm:$0xff]
        %v1510 = vld [vmem:[%s13 + $0x10] sm:$0xff]
        %v1511 = vld [vmem:[%s13 + $0x18] sm:$0xff]
        %v1513 = vsel %vm709, %v1507, 0
        %1515 = vmatpush.msra.mxu0 0.0
        %1516 = vmatpush.msra.mxu0 0.0
        %1517 = vmatpush.msra.mxu0 0.0
        %1518 = vmatpush.msra.mxu0 0.0
        %1519 = vmatpush.msra.mxu0 0.0
        %1520 = vmatpush.msra.mxu0 0.0
        %1521 = vmatpush.msra.mxu0 0.0
        %1522 = vmatpush.msra.mxu0 0.0
        %1523 = vmatpush.msra.mxu0 0.0
        %1524 = vmatpush.msra.mxu0 0.0
        %1525 = vmatpush.msra.mxu0 0.0
        %1526 = vmatpush.msra.mxu0 0.0
        %v1527 = vand.u32 %v1511, 4294901760
        %1528 = vmatpush.msra.mxu0 %v1527
        %v1529 = vand.u32 %v1510, 4294901760
        %1530 = vmatpush.msra.mxu0 %v1529
        %v1531 = vand.u32 %v1509, 4294901760
        %1532 = vmatpush.msra.mxu0 %v1531
        %v1533 = vand.u32 %v1508, 4294901760
        %1534 = vmatpush.msra.mxu0 %v1533
        %v1535 = vand.u32 %v1513, 4294901760
        %v1536 = vsub.f32 %v1513, %v1535
        %v1537 = vand.u32 %v1536, 4294901760
        %v1538 = vsub.f32 %v1536, %v1537
        %v1539 = vand.u32 %v1538, 4294901760
        %1540 = vmatmul.f32.gmra.mxu0 %v1539
        %v1541 = vpop.f32.mrf.mxu0
        %v1542 = vadd.f32 0.0, %v1541
        %1543 = vdwg.mxu0
        %1544 = vmatpush.msra.mxu0 0.0
        %1545 = vmatpush.msra.mxu0 0.0
        %1546 = vmatpush.msra.mxu0 0.0
        %1547 = vmatpush.msra.mxu0 0.0
        %1548 = vmatpush.msra.mxu0 0.0
        %1549 = vmatpush.msra.mxu0 0.0
        %1550 = vmatpush.msra.mxu0 0.0
        %1551 = vmatpush.msra.mxu0 0.0
        %1552 = vmatpush.msra.mxu0 0.0
        %1553 = vmatpush.msra.mxu0 0.0
        %1554 = vmatpush.msra.mxu0 0.0
        %1555 = vmatpush.msra.mxu0 0.0
        %v1556 = vand.u32 %v1511, 4294901760
        %v1557 = vsub.f32 %v1511, %v1556
        %v1558 = vand.u32 %v1557, 4294901760
        %v1559 = vsub.f32 %v1557, %v1558
        %v1560 = vand.u32 %v1559, 4294901760
        %1561 = vmatpush.msra.mxu0 %v1560
        %v1562 = vand.u32 %v1510, 4294901760
        %v1563 = vsub.f32 %v1510, %v1562
        %v1564 = vand.u32 %v1563, 4294901760
        %v1565 = vsub.f32 %v1563, %v1564
        %v1566 = vand.u32 %v1565, 4294901760
        %1567 = vmatpush.msra.mxu0 %v1566
        %v1568 = vand.u32 %v1509, 4294901760
        %v1569 = vsub.f32 %v1509, %v1568
        %v1570 = vand.u32 %v1569, 4294901760
        %v1571 = vsub.f32 %v1569, %v1570
        %v1572 = vand.u32 %v1571, 4294901760
        %1573 = vmatpush.msra.mxu0 %v1572
        %v1574 = vand.u32 %v1508, 4294901760
        %v1575 = vsub.f32 %v1508, %v1574
        %v1576 = vand.u32 %v1575, 4294901760
        %v1577 = vsub.f32 %v1575, %v1576
        %v1578 = vand.u32 %v1577, 4294901760
        %1579 = vmatpush.msra.mxu0 %v1578
        %v1580 = vand.u32 %v1513, 4294901760
        %1581 = vmatmul.f32.gmra.mxu0 %v1580
        %v1582 = vpop.f32.mrf.mxu0
        %v1583 = vadd.f32 %v1542, %v1582
        %1584 = vdwg.mxu0
        %1585 = vmatpush.msra.mxu0 0.0
        %1586 = vmatpush.msra.mxu0 0.0
        %1587 = vmatpush.msra.mxu0 0.0
        %1588 = vmatpush.msra.mxu0 0.0
        %1589 = vmatpush.msra.mxu0 0.0
        %1590 = vmatpush.msra.mxu0 0.0
        %1591 = vmatpush.msra.mxu0 0.0
        %1592 = vmatpush.msra.mxu0 0.0
        %1593 = vmatpush.msra.mxu0 0.0
        %1594 = vmatpush.msra.mxu0 0.0
        %1595 = vmatpush.msra.mxu0 0.0
        %1596 = vmatpush.msra.mxu0 0.0
        %v1597 = vand.u32 %v1511, 4294901760
        %v1598 = vsub.f32 %v1511, %v1597
        %1599 = vmatpush.msra.mxu0 %v1598
        %v1600 = vand.u32 %v1510, 4294901760
        %v1601 = vsub.f32 %v1510, %v1600
        %1602 = vmatpush.msra.mxu0 %v1601
        %v1603 = vand.u32 %v1509, 4294901760
        %v1604 = vsub.f32 %v1509, %v1603
        %1605 = vmatpush.msra.mxu0 %v1604
        %v1606 = vand.u32 %v1508, 4294901760
        %v1607 = vsub.f32 %v1508, %v1606
        %1608 = vmatpush.msra.mxu0 %v1607
        %v1609 = vand.u32 %v1513, 4294901760
        %v1610 = vsub.f32 %v1513, %v1609
        %1611 = vmatmul.f32.gmra.mxu0 %v1610
        %v1612 = vpop.f32.mrf.mxu0
        %v1613 = vadd.f32 %v1583, %v1612
        %1614 = vdwg.mxu0
        %1615 = vmatpush.msra.mxu0 0.0
        %1616 = vmatpush.msra.mxu0 0.0
        %1617 = vmatpush.msra.mxu0 0.0
        %1618 = vmatpush.msra.mxu0 0.0
        %1619 = vmatpush.msra.mxu0 0.0
        %1620 = vmatpush.msra.mxu0 0.0
        %1621 = vmatpush.msra.mxu0 0.0
        %1622 = vmatpush.msra.mxu0 0.0
        %1623 = vmatpush.msra.mxu0 0.0
        %1624 = vmatpush.msra.mxu0 0.0
        %1625 = vmatpush.msra.mxu0 0.0
        %1626 = vmatpush.msra.mxu0 0.0
        %v1627 = vand.u32 %v1511, 4294901760
        %1628 = vmatpush.msra.mxu0 %v1627
        %v1629 = vand.u32 %v1510, 4294901760
        %1630 = vmatpush.msra.mxu0 %v1629
        %v1631 = vand.u32 %v1509, 4294901760
        %1632 = vmatpush.msra.mxu0 %v1631
        %v1633 = vand.u32 %v1508, 4294901760
        %1634 = vmatpush.msra.mxu0 %v1633
        %v1635 = vand.u32 %v1513, 4294901760
        %v1636 = vsub.f32 %v1513, %v1635
        %v1637 = vand.u32 %v1636, 4294901760
        %1638 = vmatmul.f32.gmra.mxu0 %v1637
        %v1639 = vpop.f32.mrf.mxu0
        %v1640 = vadd.f32 %v1613, %v1639
        %1641 = vdwg.mxu0
        %1642 = vmatpush.msra.mxu0 0.0
        %1643 = vmatpush.msra.mxu0 0.0
        %1644 = vmatpush.msra.mxu0 0.0
        %1645 = vmatpush.msra.mxu0 0.0
        %1646 = vmatpush.msra.mxu0 0.0
        %1647 = vmatpush.msra.mxu0 0.0
        %1648 = vmatpush.msra.mxu0 0.0
        %1649 = vmatpush.msra.mxu0 0.0
        %1650 = vmatpush.msra.mxu0 0.0
        %1651 = vmatpush.msra.mxu0 0.0
        %1652 = vmatpush.msra.mxu0 0.0
        %1653 = vmatpush.msra.mxu0 0.0
        %v1654 = vand.u32 %v1511, 4294901760
        %v1655 = vsub.f32 %v1511, %v1654
        %v1656 = vand.u32 %v1655, 4294901760
        %1657 = vmatpush.msra.mxu0 %v1656
        %v1658 = vand.u32 %v1510, 4294901760
        %v1659 = vsub.f32 %v1510, %v1658
        %v1660 = vand.u32 %v1659, 4294901760
        %1661 = vmatpush.msra.mxu0 %v1660
        %v1662 = vand.u32 %v1509, 4294901760
        %v1663 = vsub.f32 %v1509, %v1662
        %v1664 = vand.u32 %v1663, 4294901760
        %1665 = vmatpush.msra.mxu0 %v1664
        %v1666 = vand.u32 %v1508, 4294901760
        %v1667 = vsub.f32 %v1508, %v1666
        %v1668 = vand.u32 %v1667, 4294901760
        %1669 = vmatpush.msra.mxu0 %v1668
        %v1670 = vand.u32 %v1513, 4294901760
        %1671 = vmatmul.f32.gmra.mxu0 %v1670
        %v1672 = vpop.f32.mrf.mxu0
        %v1673 = vadd.f32 %v1640, %v1672
        %1674 = vdwg.mxu0
        %1675 = vmatpush.msra.mxu0 0.0
        %1676 = vmatpush.msra.mxu0 0.0
        %1677 = vmatpush.msra.mxu0 0.0
        %1678 = vmatpush.msra.mxu0 0.0
        %1679 = vmatpush.msra.mxu0 0.0
        %1680 = vmatpush.msra.mxu0 0.0
        %1681 = vmatpush.msra.mxu0 0.0
        %1682 = vmatpush.msra.mxu0 0.0
        %1683 = vmatpush.msra.mxu0 0.0
        %1684 = vmatpush.msra.mxu0 0.0
        %1685 = vmatpush.msra.mxu0 0.0
        %1686 = vmatpush.msra.mxu0 0.0
        %v1687 = vand.u32 %v1511, 4294901760
        %1688 = vmatpush.msra.mxu0 %v1687
        %v1689 = vand.u32 %v1510, 4294901760
        %1690 = vmatpush.msra.mxu0 %v1689
        %v1691 = vand.u32 %v1509, 4294901760
        %1692 = vmatpush.msra.mxu0 %v1691
        %v1693 = vand.u32 %v1508, 4294901760
        %1694 = vmatpush.msra.mxu0 %v1693
        %v1695 = vand.u32 %v1513, 4294901760
        %1696 = vmatmul.f32.gmra.mxu0 %v1695
        %v1697 = vpop.f32.mrf.mxu0
        %v1698 = vadd.f32 %v1673, %v1697
        %1699 = vdwg.mxu0
        %v1700 = vmax.f32 %v1698, 0.0
        %v1701 = vld [vmem:[%s14] sm:$0x3]
        %v1703 = vsel %vm1119, %v1700, 0
        %v1706 = vsel %vm890, %v1701, 0
        %1708 = vmatpush.msra.mxu0 0.0
        %1709 = vmatpush.msra.mxu0 0.0
        %1710 = vmatpush.msra.mxu0 0.0
        %1711 = vmatpush.msra.mxu0 0.0
        %1712 = vmatpush.msra.mxu0 0.0
        %1713 = vmatpush.msra.mxu0 0.0
        %1714 = vmatpush.msra.mxu0 0.0
        %1715 = vmatpush.msra.mxu0 0.0
        %1716 = vmatpush.msra.mxu0 0.0
        %1717 = vmatpush.msra.mxu0 0.0
        %1718 = vmatpush.msra.mxu0 0.0
        %1719 = vmatpush.msra.mxu0 0.0
        %1720 = vmatpush.msra.mxu0 0.0
        %1721 = vmatpush.msra.mxu0 0.0
        %1722 = vmatpush.msra.mxu0 0.0
        %v1723 = vand.u32 %v1706, 4294901760
        %1724 = vmatpush.msra.mxu0 %v1723
        %v1725 = vand.u32 %v1703, 4294901760
        %v1726 = vsub.f32 %v1703, %v1725
        %v1727 = vand.u32 %v1726, 4294901760
        %v1728 = vsub.f32 %v1726, %v1727
        %v1729 = vand.u32 %v1728, 4294901760
        %1730 = vmatmul.f32.gmra.mxu0 %v1729
        %v1731 = vpop.f32.mrf.mxu0
        %v1732 = vadd.f32 0.0, %v1731
        %1733 = vdwg.mxu0
        %1734 = vmatpush.msra.mxu0 0.0
        %1735 = vmatpush.msra.mxu0 0.0
        %1736 = vmatpush.msra.mxu0 0.0
        %1737 = vmatpush.msra.mxu0 0.0
        %1738 = vmatpush.msra.mxu0 0.0
        %1739 = vmatpush.msra.mxu0 0.0
        %1740 = vmatpush.msra.mxu0 0.0
        %1741 = vmatpush.msra.mxu0 0.0
        %1742 = vmatpush.msra.mxu0 0.0
        %1743 = vmatpush.msra.mxu0 0.0
        %1744 = vmatpush.msra.mxu0 0.0
        %1745 = vmatpush.msra.mxu0 0.0
        %1746 = vmatpush.msra.mxu0 0.0
        %1747 = vmatpush.msra.mxu0 0.0
        %1748 = vmatpush.msra.mxu0 0.0
        %v1749 = vand.u32 %v1706, 4294901760
        %v1750 = vsub.f32 %v1706, %v1749
        %v1751 = vand.u32 %v1750, 4294901760
        %v1752 = vsub.f32 %v1750, %v1751
        %v1753 = vand.u32 %v1752, 4294901760
        %1754 = vmatpush.msra.mxu0 %v1753
        %v1755 = vand.u32 %v1703, 4294901760
        %1756 = vmatmul.f32.gmra.mxu0 %v1755
        %v1757 = vpop.f32.mrf.mxu0
        %v1758 = vadd.f32 %v1732, %v1757
        %1759 = vdwg.mxu0
        %1760 = vmatpush.msra.mxu0 0.0
        %1761 = vmatpush.msra.mxu0 0.0
        %1762 = vmatpush.msra.mxu0 0.0
        %1763 = vmatpush.msra.mxu0 0.0
        %1764 = vmatpush.msra.mxu0 0.0
        %1765 = vmatpush.msra.mxu0 0.0
        %1766 = vmatpush.msra.mxu0 0.0
        %1767 = vmatpush.msra.mxu0 0.0
        %1768 = vmatpush.msra.mxu0 0.0
        %1769 = vmatpush.msra.mxu0 0.0
        %1770 = vmatpush.msra.mxu0 0.0
        %1771 = vmatpush.msra.mxu0 0.0
        %1772 = vmatpush.msra.mxu0 0.0
        %1773 = vmatpush.msra.mxu0 0.0
        %1774 = vmatpush.msra.mxu0 0.0
        %v1775 = vand.u32 %v1706, 4294901760
        %v1776 = vsub.f32 %v1706, %v1775
        %1777 = vmatpush.msra.mxu0 %v1776
        %v1778 = vand.u32 %v1703, 4294901760
        %v1779 = vsub.f32 %v1703, %v1778
        %1780 = vmatmul.f32.gmra.mxu0 %v1779
        %v1781 = vpop.f32.mrf.mxu0
        %v1782 = vadd.f32 %v1758, %v1781
        %1783 = vdwg.mxu0
        %1784 = vmatpush.msra.mxu0 0.0
        %1785 = vmatpush.msra.mxu0 0.0
        %1786 = vmatpush.msra.mxu0 0.0
        %1787 = vmatpush.msra.mxu0 0.0
        %1788 = vmatpush.msra.mxu0 0.0
        %1789 = vmatpush.msra.mxu0 0.0
        %1790 = vmatpush.msra.mxu0 0.0
        %1791 = vmatpush.msra.mxu0 0.0
        %1792 = vmatpush.msra.mxu0 0.0
        %1793 = vmatpush.msra.mxu0 0.0
        %1794 = vmatpush.msra.mxu0 0.0
        %1795 = vmatpush.msra.mxu0 0.0
        %1796 = vmatpush.msra.mxu0 0.0
        %1797 = vmatpush.msra.mxu0 0.0
        %1798 = vmatpush.msra.mxu0 0.0
        %v1799 = vand.u32 %v1706, 4294901760
        %1800 = vmatpush.msra.mxu0 %v1799
        %v1801 = vand.u32 %v1703, 4294901760
        %v1802 = vsub.f32 %v1703, %v1801
        %v1803 = vand.u32 %v1802, 4294901760
        %1804 = vmatmul.f32.gmra.mxu0 %v1803
        %v1805 = vpop.f32.mrf.mxu0
        %v1806 = vadd.f32 %v1782, %v1805
        %1807 = vdwg.mxu0
        %1808 = vmatpush.msra.mxu0 0.0
        %1809 = vmatpush.msra.mxu0 0.0
        %1810 = vmatpush.msra.mxu0 0.0
        %1811 = vmatpush.msra.mxu0 0.0
        %1812 = vmatpush.msra.mxu0 0.0
        %1813 = vmatpush.msra.mxu0 0.0
        %1814 = vmatpush.msra.mxu0 0.0
        %1815 = vmatpush.msra.mxu0 0.0
        %1816 = vmatpush.msra.mxu0 0.0
        %1817 = vmatpush.msra.mxu0 0.0
        %1818 = vmatpush.msra.mxu0 0.0
        %1819 = vmatpush.msra.mxu0 0.0
        %1820 = vmatpush.msra.mxu0 0.0
        %1821 = vmatpush.msra.mxu0 0.0
        %1822 = vmatpush.msra.mxu0 0.0
        %v1823 = vand.u32 %v1706, 4294901760
        %v1824 = vsub.f32 %v1706, %v1823
        %v1825 = vand.u32 %v1824, 4294901760
        %1826 = vmatpush.msra.mxu0 %v1825
        %v1827 = vand.u32 %v1703, 4294901760
        %1828 = vmatmul.f32.gmra.mxu0 %v1827
        %v1829 = vpop.f32.mrf.mxu0
        %v1830 = vadd.f32 %v1806, %v1829
        %1831 = vdwg.mxu0
        %1832 = vmatpush.msra.mxu0 0.0
        %1833 = vmatpush.msra.mxu0 0.0
        %1834 = vmatpush.msra.mxu0 0.0
        %1835 = vmatpush.msra.mxu0 0.0
        %1836 = vmatpush.msra.mxu0 0.0
        %1837 = vmatpush.msra.mxu0 0.0
        %1838 = vmatpush.msra.mxu0 0.0
        %1839 = vmatpush.msra.mxu0 0.0
        %1840 = vmatpush.msra.mxu0 0.0
        %1841 = vmatpush.msra.mxu0 0.0
        %1842 = vmatpush.msra.mxu0 0.0
        %1843 = vmatpush.msra.mxu0 0.0
        %1844 = vmatpush.msra.mxu0 0.0
        %1845 = vmatpush.msra.mxu0 0.0
        %1846 = vmatpush.msra.mxu0 0.0
        %v1847 = vand.u32 %v1706, 4294901760
        %1848 = vmatpush.msra.mxu0 %v1847
        %v1849 = vand.u32 %v1703, 4294901760
        %1850 = vmatmul.f32.gmra.mxu0 %v1849
        %v1851 = vpop.f32.mrf.mxu0
        %v1852 = vadd.f32 %v1830, %v1851
        %1853 = vdwg.mxu0
        %v1854 = vsub.f32 0.0, %v1852
        %v1855 = vmul.f32 %v1854, 1.442695
        %v1856 = vpow.pop %v1855
        %v1857 = vadd.f32 %v1856, 1.0
        %v1858 = vrcp.pop %v1857
        %v1859 = vmul.f32 %v1857, %v1858
        %v1860 = vsub.f32 1.0, %v1859
        %v1861 = vmul.f32 %v1858, %v1860
        %v1862 = vadd.f32 %v1858, %v1861
        %vm1863 = vweird.f32 %v1857
        %vm1864 = vweird.f32 %v1858
        %vm1865 = vmor %vm1863, %vm1864
        %v1866 = vsel %vm1865, %v1858, %v1862
        %v1867 = vand.u32 2147483647, %v1857
        %vm1868 = vcmp.eq.f32.partialorder %v1867, 8.507059e+37
        %v1869 = vand.u32 %v1857, 2147483648
        %v1870 = vor.u32 1.1754944e-38, %v1869
        %v1871 = vsel %vm1868, %v1870, %v1866
        %v1872 = vmul.f32 1.0, %v1871
        %v1873 = vperm.slane %v1872, 0
        %v1874 = vmul.f32 %v1497, %v1873
        %v1875 = vadd.f32 %v1874, %v1297
        %v1876 = vmax.f32 %v1875, 0.0
        %v1877 = vpack.c.bf16 %v1876, %v1876
        %v1878 = vld [vmem:[%s15] sm:$0xf]
        %v1879 = vld [vmem:[%s15 + $0x4] sm:$0xf]
        %v1880 = vld [vmem:[%s15 + $0x8] sm:$0xf]
        %v1881 = vld [vmem:[%s15 + $0xc] sm:$0xf]
        %v1882 = vld [vmem:[%s16] sm:$0x1]
        %v1884 = vshrl.u32 %v1877, 16
        %v1886 = vrot.slane %v1884, 3
        %v1891 = vunpack.c.l.b16 %v1878
        %v1892 = vunpack.c.l.b16 %v1879
        %v1893 = vunpack.c.l.b16 %v1880
        %v1894 = vunpack.c.l.b16 %v1881
        %v1895 = vpack.c.b16 %v1892, %v1891
        %v1896 = vpack.c.b16 %v1894, %v1893
        %v1900 = vsel %vm709, %v1886, 0
        %1902 = vmatpush.bf16.msra.mxu0 0
        %1903 = vmatpush.bf16.msra.mxu0 0
        %1904 = vmatpush.bf16.msra.mxu0 0
        %1905 = vmatpush.bf16.msra.mxu0 0
        %1906 = vmatpush.bf16.msra.mxu0 0
        %1907 = vmatpush.bf16.msra.mxu0 0
        %1908 = vmatpush.bf16.msra.mxu0 %v1896
        %1909 = vmatpush.bf16.msra.mxu0 %v1895
        %1910 = vmatmul.bf16.gmra.mxu0 %v1900
        %v1911 = vpop.f32.mrf.mxu0
        %v1912 = vadd.f32 %v1882, %v1911
        %v1913 = vpop.f32.mrf.mxu0
        %1914 = vdwg.mxu0
        %v1915 = vmax.f32 %v1912, 0.0
        %v1916 = vpack.c.bf16 %v1915, %v1915
        %v1917 = vld [vmem:[%s17] sm:$0xff]
        %v1918 = vld [vmem:[%s17 + $0x8] sm:$0xff]
        %v1919 = vld [vmem:[%s17 + $0x10] sm:$0xff]
        %v1920 = vld [vmem:[%s17 + $0x18] sm:$0xff]
        %v1921 = vld [vmem:[%s17 + $0x20] sm:$0xff]
        %v1922 = vld [vmem:[%s17 + $0x28] sm:$0xff]
        %v1923 = vld [vmem:[%s17 + $0x30] sm:$0xff]
        %v1924 = vld [vmem:[%s17 + $0x38] sm:$0xff]
        %v1925 = vld [vmem:[%s17 + $0x40] sm:$0xff]
        %v1926 = vld [vmem:[%s17 + $0x48] sm:$0xff]
        %v1927 = vld [vmem:[%s17 + $0x50] sm:$0xff]
        %v1928 = vld [vmem:[%s17 + $0x58] sm:$0xff]
        %v1929 = vld [vmem:[%s17 + $0x60] sm:$0xff]
        %v1930 = vld [vmem:[%s17 + $0x68] sm:$0xff]
        %v1931 = vld [vmem:[%s17 + $0x70] sm:$0xff]
        %v1932 = vld [vmem:[%s17 + $0x78] sm:$0xff]
        %v1933 = vld [vmem:[%s18] sm:$0x3]
        %v1950 = vunpack.c.l.b16 %v1917
        %v1951 = vunpack.c.h.b16 %v1917
        %v1952 = vunpack.c.l.b16 %v1918
        %v1953 = vunpack.c.h.b16 %v1918
        %v1954 = vunpack.c.l.b16 %v1919
        %v1955 = vunpack.c.h.b16 %v1919
        %v1956 = vunpack.c.l.b16 %v1920
        %v1957 = vunpack.c.h.b16 %v1920
        %v1958 = vunpack.c.l.b16 %v1921
        %v1959 = vunpack.c.h.b16 %v1921
        %v1960 = vunpack.c.l.b16 %v1922
        %v1961 = vunpack.c.h.b16 %v1922
        %v1962 = vunpack.c.l.b16 %v1923
        %v1963 = vunpack.c.h.b16 %v1923
        %v1964 = vunpack.c.l.b16 %v1924
        %v1965 = vunpack.c.h.b16 %v1924
        %v1966 = vunpack.c.l.b16 %v1925
        %v1967 = vunpack.c.h.b16 %v1925
        %v1968 = vunpack.c.l.b16 %v1926
        %v1969 = vunpack.c.h.b16 %v1926
        %v1970 = vunpack.c.l.b16 %v1927
        %v1971 = vunpack.c.h.b16 %v1927
        %v1972 = vunpack.c.l.b16 %v1928
        %v1973 = vunpack.c.h.b16 %v1928
        %v1974 = vunpack.c.l.b16 %v1929
        %v1975 = vunpack.c.h.b16 %v1929
        %v1976 = vunpack.c.l.b16 %v1930
        %v1977 = vunpack.c.h.b16 %v1930
        %v1978 = vunpack.c.l.b16 %v1931
        %v1979 = vunpack.c.h.b16 %v1931
        %v1980 = vunpack.c.l.b16 %v1932
        %v1981 = vunpack.c.h.b16 %v1932
        %v1982 = vpack.c.b16 %v1952, %v1950
        %v1983 = vpack.c.b16 %v1953, %v1951
        %v1984 = vpack.c.b16 %v1956, %v1954
        %v1985 = vpack.c.b16 %v1957, %v1955
        %v1986 = vpack.c.b16 %v1960, %v1958
        %v1987 = vpack.c.b16 %v1961, %v1959
        %v1988 = vpack.c.b16 %v1964, %v1962
        %v1989 = vpack.c.b16 %v1965, %v1963
        %v1990 = vpack.c.b16 %v1968, %v1966
        %v1991 = vpack.c.b16 %v1969, %v1967
        %v1992 = vpack.c.b16 %v1972, %v1970
        %v1993 = vpack.c.b16 %v1973, %v1971
        %v1994 = vpack.c.b16 %v1976, %v1974
        %v1995 = vpack.c.b16 %v1977, %v1975
        %v1996 = vpack.c.b16 %v1980, %v1978
        %v1997 = vpack.c.b16 %v1981, %v1979
        %v2015 = vperm.slane %v1933, 0
        %v2016 = vperm.slane %v1933, 1
        %2019 = vmatpush.bf16.msra.mxu0 %v1996
        %2020 = vmatpush.bf16.msra.mxu0 %v1994
        %2021 = vmatpush.bf16.msra.mxu0 %v1992
        %2022 = vmatpush.bf16.msra.mxu0 %v1990
        %2023 = vmatpush.bf16.msra.mxu0 %v1988
        %2024 = vmatpush.bf16.msra.mxu0 %v1986
        %2025 = vmatpush.bf16.msra.mxu0 %v1984
        %2026 = vmatpush.bf16.msra.mxu0 %v1982
        %2027 = vmatmul.bf16.gmra.mxu0 %v1916
        %v2028 = vpop.f32.mrf.mxu0
        %v2029 = vadd.f32 %v2015, %v2028
        %v2030 = vpop.f32.mrf.mxu0
        %2031 = vdwg.mxu0
        %2032 = vmatpush.bf16.msra.mxu0 %v1997
        %2033 = vmatpush.bf16.msra.mxu0 %v1995
        %2034 = vmatpush.bf16.msra.mxu0 %v1993
        %2035 = vmatpush.bf16.msra.mxu0 %v1991
        %2036 = vmatpush.bf16.msra.mxu0 %v1989
        %2037 = vmatpush.bf16.msra.mxu0 %v1987
        %2038 = vmatpush.bf16.msra.mxu0 %v1985
        %2039 = vmatpush.bf16.msra.mxu0 %v1983
        %2040 = vmatmul.bf16.gmra.mxu0 %v1916
        %v2041 = vpop.f32.mrf.mxu0
        %v2042 = vadd.f32 %v2016, %v2041
        %v2043 = vpop.f32.mrf.mxu0
        %2044 = vdwg.mxu0
        %v2045 = vmax.f32 %v2029, 0.0
        %v2046 = vmax.f32 %v2042, 0.0
        %v2047 = vpack.c.bf16 %v2045, %v2045
        %v2048 = vld [vmem:[%s19] sm:$0xf]
        %v2049 = vld [vmem:[%s19 + $0x4] sm:$0xf]
        %v2050 = vld [vmem:[%s19 + $0x8] sm:$0xf]
        %v2051 = vld [vmem:[%s19 + $0xc] sm:$0xf]
        %v2052 = vld [vmem:[%s19 + $0x10] sm:$0xf]
        %v2053 = vld [vmem:[%s19 + $0x14] sm:$0xf]
        %v2054 = vld [vmem:[%s19 + $0x18] sm:$0xf]
        %v2055 = vld [vmem:[%s19 + $0x1c] sm:$0xf]
        %v2056 = vld [vmem:[%s20] sm:$0x1]
        %v2065 = vunpack.c.l.b16 %v2048
        %v2066 = vunpack.c.l.b16 %v2049
        %v2067 = vunpack.c.l.b16 %v2050
        %v2068 = vunpack.c.l.b16 %v2051
        %v2069 = vunpack.c.l.b16 %v2052
        %v2070 = vunpack.c.l.b16 %v2053
        %v2071 = vunpack.c.l.b16 %v2054
        %v2072 = vunpack.c.l.b16 %v2055
        %v2073 = vpack.c.b16 %v2066, %v2065
        %v2074 = vpack.c.b16 %v2068, %v2067
        %v2075 = vpack.c.b16 %v2070, %v2069
        %v2076 = vpack.c.b16 %v2072, %v2071
        %v2082 = vsel %vm805, %v2047, 0
        %2084 = vmatpush.bf16.msra.mxu0 0
        %2085 = vmatpush.bf16.msra.mxu0 0
        %2086 = vmatpush.bf16.msra.mxu0 0
        %2087 = vmatpush.bf16.msra.mxu0 0
        %2088 = vmatpush.bf16.msra.mxu0 %v2076
        %2089 = vmatpush.bf16.msra.mxu0 %v2075
        %2090 = vmatpush.bf16.msra.mxu0 %v2074
        %2091 = vmatpush.bf16.msra.mxu0 %v2073
        %2092 = vmatmul.bf16.gmra.mxu0 %v2082
        %v2093 = vpop.f32.mrf.mxu0
        %v2094 = vadd.f32 %v2056, %v2093
        %v2095 = vpop.f32.mrf.mxu0
        %2096 = vdwg.mxu0
        %v2097 = vmax.f32 %v2094, 0.0
        %s2098 = scalar_lea.vmem %s19, 32
        %v2099 = vld [vmem:[%s2098] sm:$0xf]
        %v2100 = vld [vmem:[%s2098 + $0x4] sm:$0xf]
        %v2101 = vld [vmem:[%s2098 + $0x8] sm:$0xf]
        %v2102 = vld [vmem:[%s2098 + $0xc] sm:$0xf]
        %v2103 = vld [vmem:[%s2098 + $0x10] sm:$0xf]
        %v2104 = vld [vmem:[%s2098 + $0x14] sm:$0xf]
        %v2105 = vld [vmem:[%s2098 + $0x18] sm:$0xf]
        %v2106 = vld [vmem:[%s2098 + $0x1c] sm:$0xf]
        %s2107 = scalar_lea.vmem %s20, 1
        %v2108 = vld [vmem:[%s2107] sm:$0x1]
        %2110 = vrot.lane.b32.xlu0 %v2047, 64
        %v2111 = vpop.permute.xlu0 %2110
        %v2120 = vunpack.c.l.b16 %v2099
        %v2121 = vunpack.c.l.b16 %v2100
        %v2122 = vunpack.c.l.b16 %v2101
        %v2123 = vunpack.c.l.b16 %v2102
        %v2124 = vunpack.c.l.b16 %v2103
        %v2125 = vunpack.c.l.b16 %v2104
        %v2126 = vunpack.c.l.b16 %v2105
        %v2127 = vunpack.c.l.b16 %v2106
        %v2128 = vpack.c.b16 %v2121, %v2120
        %v2129 = vpack.c.b16 %v2123, %v2122
        %v2130 = vpack.c.b16 %v2125, %v2124
        %v2131 = vpack.c.b16 %v2127, %v2126
        %v2137 = vsel %vm805, %v2111, 0
        %2139 = vmatpush.bf16.msra.mxu0 0
        %2140 = vmatpush.bf16.msra.mxu0 0
        %2141 = vmatpush.bf16.msra.mxu0 0
        %2142 = vmatpush.bf16.msra.mxu0 0
        %2143 = vmatpush.bf16.msra.mxu0 %v2131
        %2144 = vmatpush.bf16.msra.mxu0 %v2130
        %2145 = vmatpush.bf16.msra.mxu0 %v2129
        %2146 = vmatpush.bf16.msra.mxu0 %v2128
        %2147 = vmatmul.bf16.gmra.mxu0 %v2137
        %v2148 = vpop.f32.mrf.mxu0
        %v2149 = vadd.f32 %v2108, %v2148
        %v2150 = vpop.f32.mrf.mxu0
        %2151 = vdwg.mxu0
        %v2152 = vmax.f32 %v2149, 0.0
        %v2153 = vpack.c.bf16 %v2046, %v2046
        %s2154 = scalar_lea.vmem %s19, 64
        %v2155 = vld [vmem:[%s2154] sm:$0xf]
        %v2156 = vld [vmem:[%s2154 + $0x4] sm:$0xf]
        %v2157 = vld [vmem:[%s2154 + $0x8] sm:$0xf]
        %v2158 = vld [vmem:[%s2154 + $0xc] sm:$0xf]
        %v2159 = vld [vmem:[%s2154 + $0x10] sm:$0xf]
        %v2160 = vld [vmem:[%s2154 + $0x14] sm:$0xf]
        %v2161 = vld [vmem:[%s2154 + $0x18] sm:$0xf]
        %v2162 = vld [vmem:[%s2154 + $0x1c] sm:$0xf]
        %s2163 = scalar_lea.vmem %s20, 2
        %v2164 = vld [vmem:[%s2163] sm:$0x1]
        %v2173 = vunpack.c.l.b16 %v2155
        %v2174 = vunpack.c.l.b16 %v2156
        %v2175 = vunpack.c.l.b16 %v2157
        %v2176 = vunpack.c.l.b16 %v2158
        %v2177 = vunpack.c.l.b16 %v2159
        %v2178 = vunpack.c.l.b16 %v2160
        %v2179 = vunpack.c.l.b16 %v2161
        %v2180 = vunpack.c.l.b16 %v2162
        %v2181 = vpack.c.b16 %v2174, %v2173
        %v2182 = vpack.c.b16 %v2176, %v2175
        %v2183 = vpack.c.b16 %v2178, %v2177
        %v2184 = vpack.c.b16 %v2180, %v2179
        %v2190 = vsel %vm805, %v2153, 0
        %2192 = vmatpush.bf16.msra.mxu0 0
        %2193 = vmatpush.bf16.msra.mxu0 0
        %2194 = vmatpush.bf16.msra.mxu0 0
        %2195 = vmatpush.bf16.msra.mxu0 0
        %2196 = vmatpush.bf16.msra.mxu0 %v2184
        %2197 = vmatpush.bf16.msra.mxu0 %v2183
        %2198 = vmatpush.bf16.msra.mxu0 %v2182
        %2199 = vmatpush.bf16.msra.mxu0 %v2181
        %2200 = vmatmul.bf16.gmra.mxu0 %v2190
        %v2201 = vpop.f32.mrf.mxu0
        %v2202 = vadd.f32 %v2164, %v2201
        %v2203 = vpop.f32.mrf.mxu0
        %2204 = vdwg.mxu0
        %v2205 = vmax.f32 %v2202, 0.0
        %2207 = vrot.lane.b32.xlu0 %v2152, 32
        %v2208 = vpop.permute.xlu0 %2207
        %2211 = vrot.lane.b32.xlu0 %v2205, 64
        %v2212 = vpop.permute.xlu0 %2211
        %v2214 = vsel %vm709, %v2097, %v2208
        %v2215 = vsel %vm805, %v2214, %v2212
        %v2216 = vpack.c.bf16 %v2215, %v2215
        %v2217 = vld [vmem:[%s21] sm:$0xf]
        %v2218 = vld [vmem:[%s21 + $0x4] sm:$0xf]
        %v2219 = vld [vmem:[%s21 + $0x8] sm:$0xf]
        %v2220 = vld [vmem:[%s21 + $0xc] sm:$0xf]
        %v2221 = vld [vmem:[%s21 + $0x10] sm:$0xf]
        %v2222 = vld [vmem:[%s21 + $0x14] sm:$0xf]
        %v2223 = vld [vmem:[%s21 + $0x18] sm:$0xf]
        %v2224 = vld [vmem:[%s21 + $0x1c] sm:$0xf]
        %v2225 = vld [vmem:[%s21 + $0x20] sm:$0xf]
        %v2226 = vld [vmem:[%s21 + $0x24] sm:$0xf]
        %v2227 = vld [vmem:[%s21 + $0x28] sm:$0xf]
        %v2228 = vld [vmem:[%s21 + $0x2c] sm:$0xf]
        %v2229 = vld [vmem:[%s22] sm:$0x1]
        %v2242 = vunpack.c.l.b16 %v2217
        %v2243 = vunpack.c.l.b16 %v2218
        %v2244 = vunpack.c.l.b16 %v2219
        %v2245 = vunpack.c.l.b16 %v2220
        %v2246 = vunpack.c.l.b16 %v2221
        %v2247 = vunpack.c.l.b16 %v2222
        %v2248 = vunpack.c.l.b16 %v2223
        %v2249 = vunpack.c.l.b16 %v2224
        %v2250 = vunpack.c.l.b16 %v2225
        %v2251 = vunpack.c.l.b16 %v2226
        %v2252 = vunpack.c.l.b16 %v2227
        %v2253 = vunpack.c.l.b16 %v2228
        %v2254 = vpack.c.b16 %v2243, %v2242
        %v2255 = vpack.c.b16 %v2245, %v2244
        %v2256 = vpack.c.b16 %v2247, %v2246
        %v2257 = vpack.c.b16 %v2249, %v2248
        %v2258 = vpack.c.b16 %v2251, %v2250
        %v2259 = vpack.c.b16 %v2253, %v2252
        %v2267 = vsel %vm861, %v2216, 0
        %2269 = vmatpush.bf16.msra.mxu0 0
        %2270 = vmatpush.bf16.msra.mxu0 0
        %2271 = vmatpush.bf16.msra.mxu0 %v2259
        %2272 = vmatpush.bf16.msra.mxu0 %v2258
        %2273 = vmatpush.bf16.msra.mxu0 %v2257
        %2274 = vmatpush.bf16.msra.mxu0 %v2256
        %2275 = vmatpush.bf16.msra.mxu0 %v2255
        %2276 = vmatpush.bf16.msra.mxu0 %v2254
        %2277 = vmatmul.bf16.gmra.mxu0 %v2267
        %v2278 = vpop.f32.mrf.mxu0
        %v2279 = vadd.f32 %v2229, %v2278
        %v2280 = vpop.f32.mrf.mxu0
        %2281 = vdwg.mxu0
        %vm2282 = vcmask 16384
        %2283 = vst.msk [vmem:[%s702] sm:$0x1] %vm2282, %v2279
        %s2284 = sand.u32 %s533, 1
        %s2285 = scalar_lea.sflag [#allocation4], %s2284
        %s2286 = sand.u32 %s533, 1
        %s2287 = scalar_lea.vmem [#allocation3], %s2286
        // Predicated region
        $region113: #{tcnse_mtl_forward.1} parent=111 // pred_check
          %p2288 = pneg %p543
        $region114: #{tcnse_mtl_forward.1} parent=111 // pred_check_branch
          %2290 = sbr.rel (%p2288) target = $region116
        $region115: #{tcnse_mtl_forward.1} parent=111 // pred_region
          %2292 = vsyncadd %s2285, 0
          %s2293 = scalar_lea.hbm %s23, %s37
          %s2295 = sshll.u32 %s2287, 4
          %s2296 = int_to_ptr.vmem [resolvable:$true] %s2295
          %s2297 = sshll.u32 %s2293, 4
          %s2298 = int_to_ptr.hbm [resolvable:$true] %s2297
          %2300 = dma.vmem_to_hbm [thread:$0]  %s2296, 16, %s2298, %s2285
        $region116: #{tcnse_mtl_forward.1} parent=111 // pred_fallthru
          _
      $region112: #{tcnse_mtl_forward.1} parent=5 // pred_fallthru
        _
      %p2301 = scmp.le.s32.totalorder 2, %s32
      // Predicated region
      $region117: #{tcnse_mtl_forward.1} parent=5 // pred_check
        %p2302 = pneg %p2301
      $region118: #{tcnse_mtl_forward.1} parent=5 // pred_check_branch
        %2304 = sbr.rel (%p2302) target = $region120
      $region119: #{tcnse_mtl_forward.1} parent=5 // pred_region
        %s2305 = ssub.s32 %s32, 2
        // Predicated region
        $region121: #{tcnse_mtl_forward.1} parent=119 // pred_check
          %p2306 = pneg %p549
        $region122: #{tcnse_mtl_forward.1} parent=119 // pred_check_branch
          %2308 = sbr.rel (%p2306) target = $region124
        $region123: #{tcnse_mtl_forward.1} parent=119 // pred_region
          %s2309 = sand.u32 %s534, 1
          %s2310 = scalar_lea.sflag [#allocation4], %s2309
          %s2311 = sand.u32 %s534, 1
          %s2312 = scalar_lea.vmem [#allocation3], %s2311
          %2314 = dma.done %s2310, 16
        $region124: #{tcnse_mtl_forward.1} parent=119 // pred_fallthru
          _
      $region120: #{tcnse_mtl_forward.1} parent=5 // pred_fallthru
        _
    $region6: #{tcnse_mtl_forward.1} parent=1 // loop_footer
      %s36 = sadd.s32 1, %s32
    $region7: #{tcnse_mtl_forward.1} parent=1 // loop_footer_branch
      %31 = sbr.rel target = $region3
    $region8: #{tcnse_mtl_forward.1} parent=1 // loop_exit
      _
    %2315 = vsyncpa [#allocation4], 1
    %s2316 = scalar_lea.sflag [#allocation4], 1
    %2317 = vsyncpa %s2316, 1

</llo_original>
